<compile_context>
chip_gen: v6e
topology: v6e:2x2x1
jax: 0.10.0
libtpu: 0.0.40
codegen_flags: <defaults>
</compile_context>

<pallas_src>
import jax
import jax.numpy as jnp
from jax.experimental import pallas as pl
from jax.experimental.pallas import tpu as pltpu

# ---- model hyper-parameters (small, consistent with the module) ----
B = 2                 # batch
S = 8                 # sequence length
D = 32                # d_model
HEADS = 4
DK = D // HEADS       # d_key per head
DFF = 4 * D           # FFN hidden (multiplier=4)
BS = B * S
HB = HEADS * B
EPS = 1e-5            # nn.LayerNorm default eps

# Advisory cost hint for XLA's scheduler around this tiny, latency-bound custom call.
_FLOPS = 2 * (HEADS * BS * D * 3 * DK      # fused per-head QKV projection
              + HB * S * S * DK            # scores
              + HB * S * S * DK            # ctx = p @ v
              + HEADS * BS * DK * D        # per-head Wo fold
              + BS * D * DFF               # FFN up
              + BS * DFF * D)              # FFN down
_TRANSCENDENTALS = HB * S * S + HB * S + 2 * BS          # exp + vrcp + rsqrt
_BYTES = 4 * (2 * B * S * D + HEADS * D * 3 * DK + HEADS * DK * D
              + D * DFF + DFF * D + 4 * D)


def _layernorm(x, gamma, beta):
    # PyTorch nn.LayerNorm: biased variance over the last axis, default eps.
    mu = jnp.mean(x, axis=-1, keepdims=True)
    var = jnp.mean((x - mu) ** 2, axis=-1, keepdims=True)
    return (x - mu) * jax.lax.rsqrt(var + EPS) * gamma + beta


def decoder_block_kernel(x_ref, wqkv_ref, wo_ref, w1_ref, w2_ref, ln_ref, out_ref):
    x = x_ref[...].reshape(BS, D)                          # (B,S,D) -> (B*S, D)
    ln = ln_ref[...]                                       # (4, D) = [g1; b1; g2; b2]
    g1, b1 = ln[0:1, :], ln[1:2, :]
    g2, b2 = ln[2:3, :], ln[3:4, :]

    # ---- head-batched fused QKV projection -------------------------------------
    # wqkv_ref is (H, D, 3*DK) with per-head columns [q | k | v]; 1/sqrt(DK) was
    # pre-folded into the q columns at pack time. Using HEADS as the batch dim keeps
    # every contraction in the proven single-batch dot_general form, so heads never
    # need an in-kernel transpose / lane concat.
    xh = jnp.broadcast_to(x.reshape(1, BS, D), (HEADS, BS, D))
    qkv = jnp.einsum("hbd,hdk->hbk", xh, wqkv_ref[...],
                     preferred_element_type=jnp.float32)             # (H, B*S, 3*DK)
    qkv = qkv.reshape(HB, S, 3 * DK)                                 # (H*B, S, 3*DK)
    q = qkv[..., 0 * DK:1 * DK]                                      # (H*B, S, DK)
    k = qkv[..., 1 * DK:2 * DK]
    v = qkv[..., 2 * DK:3 * DK]

    # ---- attention: ONE batched score einsum, ONE softmax chain, ONE p@v -------
    s = jnp.einsum("bqd,bkd->bqk", q, k,
                   preferred_element_type=jnp.float32)               # (H*B, S, S)
    m = jnp.max(s, axis=-1, keepdims=True)
    e = jnp.exp(s - m)
    denom = jnp.sum(e, axis=-1, keepdims=True)
    p = e * pl.reciprocal(denom, approx=True)                        # EUP vrcp slot
    ctx = jnp.einsum("bqk,bkd->bqd", p, v,
                     preferred_element_type=jnp.float32)             # (H*B, S, DK)

    # ---- output projection: head concat folded into per-head Wo slices ---------
    # attn_out = sum_h ctx_h @ Wo[h*DK:(h+1)*DK, :]   (no lane-axis concat)
    ctx = ctx.reshape(HEADS, BS, DK)                                 # (H, B*S, DK)
    attn = jnp.einsum("hbd,hdo->hbo", ctx, wo_ref[...],
                      preferred_element_type=jnp.float32)            # (H, B*S, D)
    attn_out = jnp.sum(attn, axis=0)                                 # (B*S, D)

    # ---- residual + LayerNorm ---------------------------------------------------
    a1 = _layernorm(x + attn_out, g1, b1)

    # ---- FFN (Linear -> ReLU -> Linear); dropout = identity (eval / p=0) -------
    h1 = jnp.maximum(
        jnp.dot(a1, w1_ref[...], preferred_element_type=jnp.float32), 0.0)  # (B*S, DFF)
    a2 = jnp.dot(h1, w2_ref[...], preferred_element_type=jnp.float32)       # (B*S, D)

    # ---- residual + LayerNorm ---------------------------------------------------
    out_ref[...] = _layernorm(a1 + a2, g2, b2).reshape(B, S, D)


def pack_decoder_params(wq, wk, wv, wo, w1, w2, g1, b1, g2, b2):
    """One-time, init-side packing (NOT in the per-call jitted path).

    Produces exactly the 6 kernel inputs, so the jitted forward contains nothing but
    the pallas_call (no per-call concatenation or extra HBM round trip).
    """
    to_heads = lambda w: jnp.transpose(w.reshape(D, HEADS, DK), (1, 0, 2))   # (H, D, DK)
    wq_scaled = wq * jnp.float32(DK ** -0.5)          # fold 1/sqrt(d_key) into Wq
    w_qkv_h = jnp.concatenate(
        [to_heads(wq_scaled), to_heads(wk), to_heads(wv)], axis=-1)          # (H, D, 3*DK)
    wo_h = wo.reshape(HEADS, DK, D)                                          # (H, DK, D)
    ln = jnp.concatenate([g1, b1, g2, b2], axis=0)                           # (4, D)
    f32 = lambda a: jnp.asarray(a, jnp.float32)
    return f32(w_qkv_h), f32(wo_h), f32(w1), f32(w2), f32(ln)


def _full_spec(shape):
    return pl.BlockSpec(shape, lambda i, _n=len(shape): (0,) * _n)


@jax.jit
def decoder_block(x, w_qkv_h, wo_h, w1, w2, ln):
    """Per-call path: a single pallas_call, nothing else."""
    return pl.pallas_call(
        decoder_block_kernel,
        out_shape=jax.ShapeDtypeStruct((B, S, D), jnp.float32),
        grid=(1,),   # single invocation: every input DMA'd exactly once
        # TODO(synk): on v7x (2 TensorCores) a grid=(B,) "parallel" axis would use the
        # second core; kept at (1,) which is optimal for v5e/v6e (1 TC per chip).
        in_specs=[
            _full_spec((B, S, D)),           # x
            _full_spec((HEADS, D, 3 * DK)),  # per-head [q|k|v] proj (q pre-scaled)
            _full_spec((HEADS, DK, D)),      # per-head Wo rows
            _full_spec((D, DFF)),            # FFN W1
            _full_spec((DFF, D)),            # FFN W2
            _full_spec((4, D)),              # [g1; b1; g2; b2]
        ],
        out_specs=_full_spec((B, S, D)),
        compiler_params=pltpu.CompilerParams(
            dimension_semantics=("arbitrary",)),
        cost_estimate=pl.CostEstimate(
            flops=_FLOPS, transcendentals=_TRANSCENDENTALS, bytes_accessed=_BYTES),
    )(x, w_qkv_h, wo_h, w1, w2, ln)


def reference(x, wq, wk, wv, wo, w1, w2, g1, b1, g2, b2):
    """Pure-JAX mirror of the PyTorch forward (f32, exact matmuls)."""
    P = jax.lax.Precision.HIGHEST
    q = jnp.einsum("bsd,de->bse", x, wq, precision=P)
    k = jnp.einsum("bsd,de->bse", x, wk, precision=P)
    v = jnp.einsum("bsd,de->bse", x, wv, precision=P)
    heads = []
    for h in range(HEADS):
        qs, ks, vs = (t[..., h * DK:(h + 1) * DK] for t in (q, k, v))
        scores = jnp.einsum("bqd,bkd->bqk", qs, ks, precision=P) / (DK ** 0.5)
        p = jax.nn.softmax(scores, axis=-1)
        heads.append(jnp.einsum("bqk,bkd->bqd", p, vs, precision=P))
    a1_pre = jnp.einsum("bsd,de->bse", jnp.concatenate(heads, axis=-1), wo, precision=P)
    a1 = _layernorm(x + a1_pre, g1, b1)
    h1 = jnp.maximum(jnp.einsum("bsd,df->bsf", a1, w1, precision=P), 0.0)
    a2_pre = jnp.einsum("bsf,fd->bsd", h1, w2, precision=P)
    return _layernorm(a1 + a2_pre, g2, b2)


if __name__ == "__main__":
    key = jax.random.PRNGKey(0)
    ks = jax.random.split(key, 10)

    x = jax.random.normal(ks[0], (B, S, D), dtype=jnp.float32)

    scale = 1.0 / (D ** 0.5)
    wq = jax.random.normal(ks[1], (D, D), jnp.float32) * scale
    wk = jax.random.normal(ks[2], (D, D), jnp.float32) * scale
    wv = jax.random.normal(ks[3], (D, D), jnp.float32) * scale
    wo = jax.random.normal(ks[4], (D, D), jnp.float32) * scale
    w1 = jax.random.normal(ks[5], (D, DFF), jnp.float32) * scale
    w2 = jax.random.normal(ks[6], (DFF, D), jnp.float32) * (1.0 / (DFF ** 0.5))
    # LayerNorm affine params (deterministic, slightly perturbed from default 1/0)
    g1 = 1.0 + 0.1 * jax.random.normal(ks[7], (1, D), jnp.float32)
    b1 = 0.1 * jax.random.normal(ks[8], (1, D), jnp.float32)
    g2 = 1.0 + 0.1 * jax.random.normal(ks[9], (1, D), jnp.float32)
    b2 = jnp.zeros((1, D), jnp.float32)

    # One-time packing at init: the jitted per-call path is just the pallas_call.
    packed = pack_decoder_params(wq, wk, wv, wo, w1, w2, g1, b1, g2, b2)

    out = decoder_block(x, *packed)
    out = jax.block_until_ready(out)

    ref = reference(x, wq, wk, wv, wo, w1, w2, g1, b1, g2, b2)
    assert out.shape == (B, S, D)
    # Tolerance note: the module is float64 (not reproducible on TPU); the kernel is
    # f32 with generation/compiler-dependent MXU f32 pass behaviour plus an EUP
    # approx reciprocal (~2^-12 relative). Any structural bug exceeds this by >10x.
    assert jnp.allclose(out, ref, atol=1e-2, rtol=1e-2), "mismatch vs reference"

    print("KERNEL_OK")
</pallas_src>

<mosaic_0001>
module attributes {stable_mosaic.version = 11 : i64} {
  func.func @decoder_block_kernel(%arg0: i32, %arg1: memref<2x8x32xf32, #tpu.memory_space<vmem>>, %arg2: memref<4x32x24xf32, #tpu.memory_space<vmem>>, %arg3: memref<4x8x32xf32, #tpu.memory_space<vmem>>, %arg4: memref<32x128xf32, #tpu.memory_space<vmem>>, %arg5: memref<128x32xf32, #tpu.memory_space<vmem>>, %arg6: memref<4x32xf32, #tpu.memory_space<vmem>>, %arg7: memref<2x8x32xf32, #tpu.memory_space<vmem>>) attributes {dimension_semantics = [#tpu.dimension_semantics<arbitrary>], iteration_bounds = array<i64: 1>, scalar_prefetch = 0 : i64, scratch_operands = 0 : i64, tpu.core_type = #tpu.core_type<tc>, window_params = [{pipeline_mode = #tpu.pipeline_mode<synchronous>, transform_indices = @transform_0, window_bounds = array<i64: 2, 8, 32>}, {pipeline_mode = #tpu.pipeline_mode<synchronous>, transform_indices = @transform_1, window_bounds = array<i64: 4, 32, 24>}, {pipeline_mode = #tpu.pipeline_mode<synchronous>, transform_indices = @transform_2, window_bounds = array<i64: 4, 8, 32>}, {pipeline_mode = #tpu.pipeline_mode<synchronous>, transform_indices = @transform_3, window_bounds = array<i64: 32, 128>}, {pipeline_mode = #tpu.pipeline_mode<synchronous>, transform_indices = @transform_4, window_bounds = array<i64: 128, 32>}, {pipeline_mode = #tpu.pipeline_mode<synchronous>, transform_indices = @transform_5, window_bounds = array<i64: 4, 32>}, {pipeline_mode = #tpu.pipeline_mode<synchronous>, transform_indices = @transform_6, window_bounds = array<i64: 2, 8, 32>}]} {
    %c0 = arith.constant 0 : index
    %c0_0 = arith.constant 0 : index
    %c0_1 = arith.constant 0 : index
    %0 = vector.load %arg1[%c0, %c0_0, %c0_1] : memref<2x8x32xf32, #tpu.memory_space<vmem>>, vector<2x8x32xf32>
    %1 = vector.shape_cast %0 : vector<2x8x32xf32> to vector<16x32xf32>
    %c0_2 = arith.constant 0 : index
    %c0_3 = arith.constant 0 : index
    %2 = vector.load %arg6[%c0_2, %c0_3] : memref<4x32xf32, #tpu.memory_space<vmem>>, vector<4x32xf32>
    %3 = vector.extract_strided_slice %2 {offsets = [0, 0], sizes = [1, 32], strides = [1, 1]} : vector<4x32xf32> to vector<1x32xf32>
    %4 = vector.extract_strided_slice %2 {offsets = [1, 0], sizes = [1, 32], strides = [1, 1]} : vector<4x32xf32> to vector<1x32xf32>
    %5 = vector.extract_strided_slice %2 {offsets = [2, 0], sizes = [1, 32], strides = [1, 1]} : vector<4x32xf32> to vector<1x32xf32>
    %6 = vector.extract_strided_slice %2 {offsets = [3, 0], sizes = [1, 32], strides = [1, 1]} : vector<4x32xf32> to vector<1x32xf32>
    %7 = vector.shape_cast %1 : vector<16x32xf32> to vector<1x16x32xf32>
    %8 = vector.shape_cast %7 : vector<1x16x32xf32> to vector<1x16x32xf32>
    %9 = vector.broadcast %8 : vector<1x16x32xf32> to vector<4x16x32xf32>
    %c0_4 = arith.constant 0 : index
    %c0_5 = arith.constant 0 : index
    %c0_6 = arith.constant 0 : index
    %10 = vector.load %arg2[%c0_4, %c0_5, %c0_6] : memref<4x32x24xf32, #tpu.memory_space<vmem>>, vector<4x32x24xf32>
    "tpu.trace_start"() <{level = 10 : i32, message = "hbd,hdk->hbk"}> : () -> ()
    %cst = arith.constant dense<0.000000e+00> : vector<4x16x24xf32>
    %11 = tpu.matmul %9, %10, %cst {dimension_numbers = #tpu.dot_dimension_numbers<[2], [1], [1], [2], [0, 0, 0, 1, 1, 2], [0], [0]>} : vector<4x16x32xf32>, vector<4x32x24xf32>, vector<4x16x24xf32> -> vector<4x16x24xf32>
    "tpu.trace_stop"() : () -> ()
    %12 = vector.shape_cast %11 : vector<4x16x24xf32> to vector<8x8x24xf32>
    %13 = vector.extract_strided_slice %12 {offsets = [0, 0, 0], sizes = [8, 8, 8], strides = [1, 1, 1]} : vector<8x8x24xf32> to vector<8x8x8xf32>
    %14 = vector.extract_strided_slice %12 {offsets = [0, 0, 8], sizes = [8, 8, 8], strides = [1, 1, 1]} : vector<8x8x24xf32> to vector<8x8x8xf32>
    %15 = vector.extract_strided_slice %12 {offsets = [0, 0, 16], sizes = [8, 8, 8], strides = [1, 1, 1]} : vector<8x8x24xf32> to vector<8x8x8xf32>
    "tpu.trace_start"() <{level = 10 : i32, message = "bqd,bkd->bqk"}> : () -> ()
    %cst_7 = arith.constant dense<0.000000e+00> : vector<8x8x8xf32>
    %16 = tpu.matmul %13, %14, %cst_7 {dimension_numbers = #tpu.dot_dimension_numbers<[2], [2], [1], [1], [0, 0, 0, 1, 1, 1], [0], [0]>} : vector<8x8x8xf32>, vector<8x8x8xf32>, vector<8x8x8xf32> -> vector<8x8x8xf32>
    "tpu.trace_stop"() : () -> ()
    %cst_8 = arith.constant dense<0xFF800000> : vector<8x8xf32>
    %17 = vector.multi_reduction <maximumf>, %16, %cst_8 [2] : vector<8x8x8xf32> to vector<8x8xf32>
    %18 = vector.shape_cast %17 : vector<8x8xf32> to vector<8x8x1xf32>
    %19 = vector.broadcast %18 : vector<8x8x1xf32> to vector<8x8x8xf32>
    %20 = arith.subf %16, %19 : vector<8x8x8xf32>
    %21 = math.exp %20 : vector<8x8x8xf32>
    %cst_9 = arith.constant dense<0.000000e+00> : vector<8x8xf32>
    %22 = vector.multi_reduction <add>, %21, %cst_9 [2] : vector<8x8x8xf32> to vector<8x8xf32>
    %23 = vector.shape_cast %22 : vector<8x8xf32> to vector<8x8x1xf32>
    %24 = tpu.reciprocal %23 {approx = true} : vector<8x8x1xf32> -> vector<8x8x1xf32>
    %25 = vector.broadcast %24 : vector<8x8x1xf32> to vector<8x8x8xf32>
    %26 = arith.mulf %21, %25 : vector<8x8x8xf32>
    "tpu.trace_start"() <{level = 10 : i32, message = "bqk,bkd->bqd"}> : () -> ()
    %cst_10 = arith.constant dense<0.000000e+00> : vector<8x8x8xf32>
    %27 = tpu.matmul %26, %15, %cst_10 {dimension_numbers = #tpu.dot_dimension_numbers<[2], [1], [1], [2], [0, 0, 0, 1, 1, 2], [0], [0]>} : vector<8x8x8xf32>, vector<8x8x8xf32>, vector<8x8x8xf32> -> vector<8x8x8xf32>
    "tpu.trace_stop"() : () -> ()
    %28 = vector.shape_cast %27 : vector<8x8x8xf32> to vector<4x16x8xf32>
    %c0_11 = arith.constant 0 : index
    %c0_12 = arith.constant 0 : index
    %c0_13 = arith.constant 0 : index
    %29 = vector.load %arg3[%c0_11, %c0_12, %c0_13] : memref<4x8x32xf32, #tpu.memory_space<vmem>>, vector<4x8x32xf32>
    "tpu.trace_start"() <{level = 10 : i32, message = "hbd,hdo->hbo"}> : () -> ()
    %cst_14 = arith.constant dense<0.000000e+00> : vector<4x16x32xf32>
    %30 = tpu.matmul %28, %29, %cst_14 {dimension_numbers = #tpu.dot_dimension_numbers<[2], [1], [1], [2], [0, 0, 0, 1, 1, 2], [0], [0]>} : vector<4x16x8xf32>, vector<4x8x32xf32>, vector<4x16x32xf32> -> vector<4x16x32xf32>
    "tpu.trace_stop"() : () -> ()
    %cst_15 = arith.constant dense<0.000000e+00> : vector<16x32xf32>
    %31 = vector.multi_reduction <add>, %30, %cst_15 [0] : vector<4x16x32xf32> to vector<16x32xf32>
    %32 = arith.addf %1, %31 : vector<16x32xf32>
    %cst_16 = arith.constant dense<0.000000e+00> : vector<16xf32>
    %33 = vector.multi_reduction <add>, %32, %cst_16 [1] : vector<16x32xf32> to vector<16xf32>
    %34 = vector.shape_cast %33 : vector<16xf32> to vector<16x1xf32>
    %cst_17 = arith.constant 3.200000e+01 : f32
    %35 = vector.broadcast %cst_17 : f32 to vector<16x1xf32>
    %36 = arith.divf %34, %35 : vector<16x1xf32>
    %37 = vector.broadcast %36 : vector<16x1xf32> to vector<16x32xf32>
    %38 = arith.subf %32, %37 : vector<16x32xf32>
    %39 = arith.mulf %38, %38 : vector<16x32xf32>
    %cst_18 = arith.constant dense<0.000000e+00> : vector<16xf32>
    %40 = vector.multi_reduction <add>, %39, %cst_18 [1] : vector<16x32xf32> to vector<16xf32>
    %41 = vector.shape_cast %40 : vector<16xf32> to vector<16x1xf32>
    %cst_19 = arith.constant 3.200000e+01 : f32
    %42 = vector.broadcast %cst_19 : f32 to vector<16x1xf32>
    %43 = arith.divf %41, %42 : vector<16x1xf32>
    %44 = vector.broadcast %36 : vector<16x1xf32> to vector<16x32xf32>
    %45 = arith.subf %32, %44 : vector<16x32xf32>
    %cst_20 = arith.constant 9.99999974E-6 : f32
    %46 = vector.broadcast %cst_20 : f32 to vector<16x1xf32>
    %47 = arith.addf %43, %46 : vector<16x1xf32>
    %48 = math.rsqrt %47 : vector<16x1xf32>
    %49 = vector.broadcast %48 : vector<16x1xf32> to vector<16x32xf32>
    %50 = arith.mulf %45, %49 : vector<16x32xf32>
    %51 = vector.broadcast %3 : vector<1x32xf32> to vector<16x32xf32>
    %52 = arith.mulf %50, %51 : vector<16x32xf32>
    %53 = vector.broadcast %4 : vector<1x32xf32> to vector<16x32xf32>
    %54 = arith.addf %52, %53 : vector<16x32xf32>
    %c0_21 = arith.constant 0 : index
    %c0_22 = arith.constant 0 : index
    %55 = vector.load %arg4[%c0_21, %c0_22] : memref<32x128xf32, #tpu.memory_space<vmem>>, vector<32x128xf32>
    %cst_23 = arith.constant dense<0.000000e+00> : vector<16x128xf32>
    %56 = tpu.matmul %54, %55, %cst_23 {dimension_numbers = #tpu.dot_dimension_numbers<[1], [0], [0], [1], [0, 0, 1, 1], [], []>} : vector<16x32xf32>, vector<32x128xf32>, vector<16x128xf32> -> vector<16x128xf32>
    %cst_24 = arith.constant 0.000000e+00 : f32
    %57 = vector.broadcast %cst_24 : f32 to vector<16x128xf32>
    %58 = arith.maximumf %56, %57 : vector<16x128xf32>
    %c0_25 = arith.constant 0 : index
    %c0_26 = arith.constant 0 : index
    %59 = vector.load %arg5[%c0_25, %c0_26] : memref<128x32xf32, #tpu.memory_space<vmem>>, vector<128x32xf32>
    %cst_27 = arith.constant dense<0.000000e+00> : vector<16x32xf32>
    %60 = tpu.matmul %58, %59, %cst_27 {dimension_numbers = #tpu.dot_dimension_numbers<[1], [0], [0], [1], [0, 0, 1, 1], [], []>} : vector<16x128xf32>, vector<128x32xf32>, vector<16x32xf32> -> vector<16x32xf32>
    %61 = arith.addf %54, %60 : vector<16x32xf32>
    %cst_28 = arith.constant dense<0.000000e+00> : vector<16xf32>
    %62 = vector.multi_reduction <add>, %61, %cst_28 [1] : vector<16x32xf32> to vector<16xf32>
    %63 = vector.shape_cast %62 : vector<16xf32> to vector<16x1xf32>
    %cst_29 = arith.constant 3.200000e+01 : f32
    %64 = vector.broadcast %cst_29 : f32 to vector<16x1xf32>
    %65 = arith.divf %63, %64 : vector<16x1xf32>
    %66 = vector.broadcast %65 : vector<16x1xf32> to vector<16x32xf32>
    %67 = arith.subf %61, %66 : vector<16x32xf32>
    %68 = arith.mulf %67, %67 : vector<16x32xf32>
    %cst_30 = arith.constant dense<0.000000e+00> : vector<16xf32>
    %69 = vector.multi_reduction <add>, %68, %cst_30 [1] : vector<16x32xf32> to vector<16xf32>
    %70 = vector.shape_cast %69 : vector<16xf32> to vector<16x1xf32>
    %cst_31 = arith.constant 3.200000e+01 : f32
    %71 = vector.broadcast %cst_31 : f32 to vector<16x1xf32>
    %72 = arith.divf %70, %71 : vector<16x1xf32>
    %73 = vector.broadcast %65 : vector<16x1xf32> to vector<16x32xf32>
    %74 = arith.subf %61, %73 : vector<16x32xf32>
    %cst_32 = arith.constant 9.99999974E-6 : f32
    %75 = vector.broadcast %cst_32 : f32 to vector<16x1xf32>
    %76 = arith.addf %72, %75 : vector<16x1xf32>
    %77 = math.rsqrt %76 : vector<16x1xf32>
    %78 = vector.broadcast %77 : vector<16x1xf32> to vector<16x32xf32>
    %79 = arith.mulf %74, %78 : vector<16x32xf32>
    %80 = vector.broadcast %5 : vector<1x32xf32> to vector<16x32xf32>
    %81 = arith.mulf %79, %80 : vector<16x32xf32>
    %82 = vector.broadcast %6 : vector<1x32xf32> to vector<16x32xf32>
    %83 = arith.addf %81, %82 : vector<16x32xf32>
    %84 = vector.shape_cast %83 : vector<16x32xf32> to vector<2x8x32xf32>
    %c0_33 = arith.constant 0 : index
    %c0_34 = arith.constant 0 : index
    %c0_35 = arith.constant 0 : index
    %85 = vector.load %arg7[%c0_33, %c0_34, %c0_35] : memref<2x8x32xf32, #tpu.memory_space<vmem>>, vector<2x8x32xf32>
    tpu.vector_store %arg7[%c0_33, %c0_34, %c0_35], %84 {strides = array<i32>} : memref<2x8x32xf32, #tpu.memory_space<vmem>>, vector<2x8x32xf32>,
    return
  }
  func.func @transform_0(%arg0: i32) -> (i32, i32, i32) {
    %c0_i32 = arith.constant 0 : i32
    %c0_i32_0 = arith.constant 0 : i32
    %c0_i32_1 = arith.constant 0 : i32
    %c0_i32_2 = arith.constant 0 : i32
    return %c0_i32, %c0_i32_0, %c0_i32_1 : i32, i32, i32
  }
  func.func @transform_1(%arg0: i32) -> (i32, i32, i32) {
    %c0_i32 = arith.constant 0 : i32
    %c0_i32_0 = arith.constant 0 : i32
    %c0_i32_1 = arith.constant 0 : i32
    %c0_i32_2 = arith.constant 0 : i32
    return %c0_i32, %c0_i32_0, %c0_i32_1 : i32, i32, i32
  }
  func.func @transform_2(%arg0: i32) -> (i32, i32, i32) {
    %c0_i32 = arith.constant 0 : i32
    %c0_i32_0 = arith.constant 0 : i32
    %c0_i32_1 = arith.constant 0 : i32
    %c0_i32_2 = arith.constant 0 : i32
    return %c0_i32, %c0_i32_0, %c0_i32_1 : i32, i32, i32
  }
  func.func @transform_3(%arg0: i32) -> (i32, i32) {
    %c0_i32 = arith.constant 0 : i32
    %c0_i32_0 = arith.constant 0 : i32
    %c0_i32_1 = arith.constant 0 : i32
    return %c0_i32, %c0_i32_0 : i32, i32
  }
  func.func @transform_4(%arg0: i32) -> (i32, i32) {
    %c0_i32 = arith.constant 0 : i32
    %c0_i32_0 = arith.constant 0 : i32
    %c0_i32_1 = arith.constant 0 : i32
    return %c0_i32, %c0_i32_0 : i32, i32
  }
  func.func @transform_5(%arg0: i32) -> (i32, i32) {
    %c0_i32 = arith.constant 0 : i32
    %c0_i32_0 = arith.constant 0 : i32
    %c0_i32_1 = arith.constant 0 : i32
    return %c0_i32, %c0_i32_0 : i32, i32
  }
  func.func @transform_6(%arg0: i32) -> (i32, i32, i32) {
    %c0_i32 = arith.constant 0 : i32
    %c0_i32_0 = arith.constant 0 : i32
    %c0_i32_1 = arith.constant 0 : i32
    %c0_i32_2 = arith.constant 0 : i32
    return %c0_i32, %c0_i32_0, %c0_i32_1 : i32, i32, i32
  }
}

</mosaic_0001>

<llo_original>
// kernel: decoder_block.1
$region0: #{decoder_block.1}
  #allocation0 [shape = 'u32[]', space=smem, size = 0x4, offset = 0x4, fixed_abs, tag = 'smem constant byte address 0x4 - core index']
  #allocation1 [shape = 'u32[144,128]{1,0:T(1,128)}', space=vmem, size = 0x12000, scoped, tag = 'internal scratch']
  %s0 = inlined_call_operand.vmem [shape: f32[2,8,32], index: 0, kind: input, shape index: {}]
  %s1 = inlined_call_operand.vmem [shape: f32[4,32,24], index: 1, kind: input, shape index: {}]
  %s2 = inlined_call_operand.vmem [shape: f32[4,8,32], index: 2, kind: input, shape index: {}]
  %s3 = inlined_call_operand.vmem [shape: f32[32,128], index: 3, kind: input, shape index: {}]
  %s4 = inlined_call_operand.vmem [shape: f32[128,32], index: 4, kind: input, shape index: {}]
  %s5 = inlined_call_operand.vmem [shape: f32[4,32], index: 5, kind: input, shape index: {}]
  %s6 = inlined_call_operand.hbm [shape: f32[2,8,32], index: 6, kind: output, shape index: {}]
  %s7 = sld [smem:[#allocation0]]
  $region34: #{decoder_block.1} parent=0
    _
  %s9 = ssub.s32 1, %s7
  %s10 = scalar_select 0, %s9, %s7
  $region1: #{decoder_block.1} parent=0
    #allocation2 [shape = 'u8[8192]{0}', space=vmem, size = 0x2000, scoped, tag = 'output window, operand 0, single buffered']
    #allocation3 [shape = 's32[1]{0}', space=sflag, size = 0x4, scoped, tag = 'scoped memory for decoder_block.1']
    %11 = vsyncpa [#allocation3], 0
    // Predicated region
    $region2: #{decoder_block.1} parent=1 // pred_check
      _
    $region3: #{decoder_block.1} parent=1 // pred_check_branch
      %13 = sbr.rel (0) target = $region5
    $region4: #{decoder_block.1} parent=1 // pred_region
      _
    $region5: #{decoder_block.1} parent=1 // pred_fallthru
      _
    // Predicated region
    $region6: #{decoder_block.1} parent=1 // pred_check
      _
    $region7: #{decoder_block.1} parent=1 // pred_check_branch
      %15 = sbr.rel (0) target = $region9
    $region8: #{decoder_block.1} parent=1 // pred_region
      _
    $region9: #{decoder_block.1} parent=1 // pred_fallthru
      _
    // Predicated region
    $region10: #{decoder_block.1} parent=1 // pred_check
      _
    $region11: #{decoder_block.1} parent=1 // pred_check_branch
      %17 = sbr.rel (0) target = $region13
    $region12: #{decoder_block.1} parent=1 // pred_region
      _
    $region13: #{decoder_block.1} parent=1 // pred_fallthru
      _
    // Predicated region
    $region14: #{decoder_block.1} parent=1 // pred_check
      _
    $region15: #{decoder_block.1} parent=1 // pred_check_branch
      %19 = sbr.rel (0) target = $region17
    $region16: #{decoder_block.1} parent=1 // pred_region
      _
    $region17: #{decoder_block.1} parent=1 // pred_fallthru
      _
    // Predicated region
    $region18: #{decoder_block.1} parent=1 // pred_check
      _
    $region19: #{decoder_block.1} parent=1 // pred_check_branch
      %21 = sbr.rel (0) target = $region21
    $region20: #{decoder_block.1} parent=1 // pred_region
      _
    $region21: #{decoder_block.1} parent=1 // pred_fallthru
      _
    // Predicated region
    $region22: #{decoder_block.1} parent=1 // pred_check
      _
    $region23: #{decoder_block.1} parent=1 // pred_check_branch
      %23 = sbr.rel (0) target = $region25
    $region24: #{decoder_block.1} parent=1 // pred_region
      _
    $region25: #{decoder_block.1} parent=1 // pred_fallthru
      _
    %v24 = vld [vmem:[%s0] sm:$0xff]
    %v25 = vld [vmem:[%s0 + $0x8] sm:$0xff]
    %v26 = vld [vmem:[%s5] sm:$0xf]
    %v27 = vld [vmem:[%s1] sm:$0xff]
    %v28 = vld [vmem:[%s1 + $0x8] sm:$0xff]
    %v29 = vld [vmem:[%s1 + $0x10] sm:$0xff]
    %v30 = vld [vmem:[%s1 + $0x18] sm:$0xff]
    %v31 = vld [vmem:[%s1 + $0x20] sm:$0xff]
    %v32 = vld [vmem:[%s1 + $0x28] sm:$0xff]
    %v33 = vld [vmem:[%s1 + $0x30] sm:$0xff]
    %v34 = vld [vmem:[%s1 + $0x38] sm:$0xff]
    %v35 = vld [vmem:[%s1 + $0x40] sm:$0xff]
    %v36 = vld [vmem:[%s1 + $0x48] sm:$0xff]
    %v37 = vld [vmem:[%s1 + $0x50] sm:$0xff]
    %v38 = vld [vmem:[%s1 + $0x58] sm:$0xff]
    %v39 = vld [vmem:[%s1 + $0x60] sm:$0xff]
    %v40 = vld [vmem:[%s1 + $0x68] sm:$0xff]
    %v41 = vld [vmem:[%s1 + $0x70] sm:$0xff]
    %v42 = vld [vmem:[%s1 + $0x78] sm:$0xff]
    %vm43 = vcmask 261120
    %v45 = vsel %vm43, %v24, 0
    %v48 = vsel %vm43, %v25, 0
    %50 = vmatprep.subr.mxu0 0.0
    %51 = vmatpush1.msra.mxu0 0.0
    %52 = vmatprep.subr.mxu0 0.0
    %53 = vmatpush1.msra.mxu0 0.0
    %54 = vmatprep.subr.mxu0 0.0
    %55 = vmatpush1.msra.mxu0 0.0
    %56 = vmatprep.subr.mxu0 0.0
    %57 = vmatpush1.msra.mxu0 0.0
    %58 = vmatprep.subr.mxu0 0.0
    %59 = vmatpush1.msra.mxu0 0.0
    %60 = vmatprep.subr.mxu0 0.0
    %61 = vmatpush1.msra.mxu0 0.0
    %62 = vmatprep.subr.mxu0 0.0
    %63 = vmatpush1.msra.mxu0 0.0
    %64 = vmatprep.subr.mxu0 0.0
    %65 = vmatpush1.msra.mxu0 0.0
    %66 = vmatprep.subr.mxu0 0.0
    %67 = vmatpush1.msra.mxu0 0.0
    %68 = vmatprep.subr.mxu0 0.0
    %69 = vmatpush1.msra.mxu0 0.0
    %70 = vmatprep.subr.mxu0 0.0
    %71 = vmatpush1.msra.mxu0 0.0
    %72 = vmatprep.subr.mxu0 0.0
    %73 = vmatpush1.msra.mxu0 0.0
    %74 = vmatprep.subr.mxu0 0.0
    %75 = vmatpush1.msra.mxu0 %v30
    %76 = vmatprep.subr.mxu0 0.0
    %77 = vmatpush1.msra.mxu0 %v29
    %78 = vmatprep.subr.mxu0 0.0
    %79 = vmatpush1.msra.mxu0 %v28
    %80 = vmatprep.subr.mxu0 0.0
    %81 = vmatpush1.msra.mxu0 %v27
    %82 = vmatprep.subr.mxu0 0.0
    %83 = vmatpush2.msra.mxu0 0.0
    %84 = vmatprep.subr.mxu0 0.0
    %85 = vmatpush2.msra.mxu0 0.0
    %86 = vmatprep.subr.mxu0 0.0
    %87 = vmatpush2.msra.mxu0 0.0
    %88 = vmatprep.subr.mxu0 0.0
    %89 = vmatpush2.msra.mxu0 0.0
    %90 = vmatprep.subr.mxu0 0.0
    %91 = vmatpush2.msra.mxu0 0.0
    %92 = vmatprep.subr.mxu0 0.0
    %93 = vmatpush2.msra.mxu0 0.0
    %94 = vmatprep.subr.mxu0 0.0
    %95 = vmatpush2.msra.mxu0 0.0
    %96 = vmatprep.subr.mxu0 0.0
    %97 = vmatpush2.msra.mxu0 0.0
    %98 = vmatprep.subr.mxu0 0.0
    %99 = vmatpush2.msra.mxu0 0.0
    %100 = vmatprep.subr.mxu0 0.0
    %101 = vmatpush2.msra.mxu0 0.0
    %102 = vmatprep.subr.mxu0 0.0
    %103 = vmatpush2.msra.mxu0 0.0
    %104 = vmatprep.subr.mxu0 0.0
    %105 = vmatpush2.msra.mxu0 0.0
    %106 = vmatprep.subr.mxu0 0.0
    %107 = vmatpush2.msra.mxu0 0.0
    %108 = vmatprep.subr.mxu0 0.0
    %109 = vmatpush2.msra.mxu0 0.0
    %110 = vmatprep.subr.mxu0 0.0
    %111 = vmatpush2.msra.mxu0 0.0
    %112 = vmatprep.subr.mxu0 0.0
    %113 = vmatpush2.msra.mxu0 0.0
    %114 = vmatprep.mubr.f32.mxu0 0.0
    %115 = vmatmul.mubr.f32.gmra.mxu0 %v45
    %v116 = vpop.f32.mrf.mxu0
    %v117 = vadd.f32 0.0, %v116
    %v118 = vpop.f32.mrf.mxu0
    %119 = vmatprep.mubr.f32.mxu0 0.0
    %120 = vmatmul.mubr.f32.gmra.mxu0 %v48
    %v121 = vpop.f32.mrf.mxu0
    %v122 = vadd.f32 0.0, %v121
    %v123 = vpop.f32.mrf.mxu0
    %124 = vdwg.mxu0
    %125 = vmatprep.subr.mxu0 0.0
    %126 = vmatpush1.msra.mxu0 0.0
    %127 = vmatprep.subr.mxu0 0.0
    %128 = vmatpush1.msra.mxu0 0.0
    %129 = vmatprep.subr.mxu0 0.0
    %130 = vmatpush1.msra.mxu0 0.0
    %131 = vmatprep.subr.mxu0 0.0
    %132 = vmatpush1.msra.mxu0 0.0
    %133 = vmatprep.subr.mxu0 0.0
    %134 = vmatpush1.msra.mxu0 0.0
    %135 = vmatprep.subr.mxu0 0.0
    %136 = vmatpush1.msra.mxu0 0.0
    %137 = vmatprep.subr.mxu0 0.0
    %138 = vmatpush1.msra.mxu0 0.0
    %139 = vmatprep.subr.mxu0 0.0
    %140 = vmatpush1.msra.mxu0 0.0
    %141 = vmatprep.subr.mxu0 0.0
    %142 = vmatpush1.msra.mxu0 0.0
    %143 = vmatprep.subr.mxu0 0.0
    %144 = vmatpush1.msra.mxu0 0.0
    %145 = vmatprep.subr.mxu0 0.0
    %146 = vmatpush1.msra.mxu0 0.0
    %147 = vmatprep.subr.mxu0 0.0
    %148 = vmatpush1.msra.mxu0 0.0
    %149 = vmatprep.subr.mxu0 0.0
    %150 = vmatpush1.msra.mxu0 %v34
    %151 = vmatprep.subr.mxu0 0.0
    %152 = vmatpush1.msra.mxu0 %v33
    %153 = vmatprep.subr.mxu0 0.0
    %154 = vmatpush1.msra.mxu0 %v32
    %155 = vmatprep.subr.mxu0 0.0
    %156 = vmatpush1.msra.mxu0 %v31
    %157 = vmatprep.subr.mxu0 0.0
    %158 = vmatpush2.msra.mxu0 0.0
    %159 = vmatprep.subr.mxu0 0.0
    %160 = vmatpush2.msra.mxu0 0.0
    %161 = vmatprep.subr.mxu0 0.0
    %162 = vmatpush2.msra.mxu0 0.0
    %163 = vmatprep.subr.mxu0 0.0
    %164 = vmatpush2.msra.mxu0 0.0
    %165 = vmatprep.subr.mxu0 0.0
    %166 = vmatpush2.msra.mxu0 0.0
    %167 = vmatprep.subr.mxu0 0.0
    %168 = vmatpush2.msra.mxu0 0.0
    %169 = vmatprep.subr.mxu0 0.0
    %170 = vmatpush2.msra.mxu0 0.0
    %171 = vmatprep.subr.mxu0 0.0
    %172 = vmatpush2.msra.mxu0 0.0
    %173 = vmatprep.subr.mxu0 0.0
    %174 = vmatpush2.msra.mxu0 0.0
    %175 = vmatprep.subr.mxu0 0.0
    %176 = vmatpush2.msra.mxu0 0.0
    %177 = vmatprep.subr.mxu0 0.0
    %178 = vmatpush2.msra.mxu0 0.0
    %179 = vmatprep.subr.mxu0 0.0
    %180 = vmatpush2.msra.mxu0 0.0
    %181 = vmatprep.subr.mxu0 0.0
    %182 = vmatpush2.msra.mxu0 0.0
    %183 = vmatprep.subr.mxu0 0.0
    %184 = vmatpush2.msra.mxu0 0.0
    %185 = vmatprep.subr.mxu0 0.0
    %186 = vmatpush2.msra.mxu0 0.0
    %187 = vmatprep.subr.mxu0 0.0
    %188 = vmatpush2.msra.mxu0 0.0
    %189 = vmatprep.mubr.f32.mxu0 0.0
    %190 = vmatmul.mubr.f32.gmra.mxu0 %v45
    %v191 = vpop.f32.mrf.mxu0
    %v192 = vadd.f32 0.0, %v191
    %v193 = vpop.f32.mrf.mxu0
    %194 = vmatprep.mubr.f32.mxu0 0.0
    %195 = vmatmul.mubr.f32.gmra.mxu0 %v48
    %v196 = vpop.f32.mrf.mxu0
    %v197 = vadd.f32 0.0, %v196
    %v198 = vpop.f32.mrf.mxu0
    %199 = vdwg.mxu0
    %200 = vmatprep.subr.mxu0 0.0
    %201 = vmatpush1.msra.mxu0 0.0
    %202 = vmatprep.subr.mxu0 0.0
    %203 = vmatpush1.msra.mxu0 0.0
    %204 = vmatprep.subr.mxu0 0.0
    %205 = vmatpush1.msra.mxu0 0.0
    %206 = vmatprep.subr.mxu0 0.0
    %207 = vmatpush1.msra.mxu0 0.0
    %208 = vmatprep.subr.mxu0 0.0
    %209 = vmatpush1.msra.mxu0 0.0
    %210 = vmatprep.subr.mxu0 0.0
    %211 = vmatpush1.msra.mxu0 0.0
    %212 = vmatprep.subr.mxu0 0.0
    %213 = vmatpush1.msra.mxu0 0.0
    %214 = vmatprep.subr.mxu0 0.0
    %215 = vmatpush1.msra.mxu0 0.0
    %216 = vmatprep.subr.mxu0 0.0
    %217 = vmatpush1.msra.mxu0 0.0
    %218 = vmatprep.subr.mxu0 0.0
    %219 = vmatpush1.msra.mxu0 0.0
    %220 = vmatprep.subr.mxu0 0.0
    %221 = vmatpush1.msra.mxu0 0.0
    %222 = vmatprep.subr.mxu0 0.0
    %223 = vmatpush1.msra.mxu0 0.0
    %224 = vmatprep.subr.mxu0 0.0
    %225 = vmatpush1.msra.mxu0 %v38
    %226 = vmatprep.subr.mxu0 0.0
    %227 = vmatpush1.msra.mxu0 %v37
    %228 = vmatprep.subr.mxu0 0.0
    %229 = vmatpush1.msra.mxu0 %v36
    %230 = vmatprep.subr.mxu0 0.0
    %231 = vmatpush1.msra.mxu0 %v35
    %232 = vmatprep.subr.mxu0 0.0
    %233 = vmatpush2.msra.mxu0 0.0
    %234 = vmatprep.subr.mxu0 0.0
    %235 = vmatpush2.msra.mxu0 0.0
    %236 = vmatprep.subr.mxu0 0.0
    %237 = vmatpush2.msra.mxu0 0.0
    %238 = vmatprep.subr.mxu0 0.0
    %239 = vmatpush2.msra.mxu0 0.0
    %240 = vmatprep.subr.mxu0 0.0
    %241 = vmatpush2.msra.mxu0 0.0
    %242 = vmatprep.subr.mxu0 0.0
    %243 = vmatpush2.msra.mxu0 0.0
    %244 = vmatprep.subr.mxu0 0.0
    %245 = vmatpush2.msra.mxu0 0.0
    %246 = vmatprep.subr.mxu0 0.0
    %247 = vmatpush2.msra.mxu0 0.0
    %248 = vmatprep.subr.mxu0 0.0
    %249 = vmatpush2.msra.mxu0 0.0
    %250 = vmatprep.subr.mxu0 0.0
    %251 = vmatpush2.msra.mxu0 0.0
    %252 = vmatprep.subr.mxu0 0.0
    %253 = vmatpush2.msra.mxu0 0.0
    %254 = vmatprep.subr.mxu0 0.0
    %255 = vmatpush2.msra.mxu0 0.0
    %256 = vmatprep.subr.mxu0 0.0
    %257 = vmatpush2.msra.mxu0 0.0
    %258 = vmatprep.subr.mxu0 0.0
    %259 = vmatpush2.msra.mxu0 0.0
    %260 = vmatprep.subr.mxu0 0.0
    %261 = vmatpush2.msra.mxu0 0.0
    %262 = vmatprep.subr.mxu0 0.0
    %263 = vmatpush2.msra.mxu0 0.0
    %264 = vmatprep.mubr.f32.mxu0 0.0
    %265 = vmatmul.mubr.f32.gmra.mxu0 %v45
    %v266 = vpop.f32.mrf.mxu0
    %v267 = vadd.f32 0.0, %v266
    %v268 = vpop.f32.mrf.mxu0
    %269 = vmatprep.mubr.f32.mxu0 0.0
    %270 = vmatmul.mubr.f32.gmra.mxu0 %v48
    %v271 = vpop.f32.mrf.mxu0
    %v272 = vadd.f32 0.0, %v271
    %v273 = vpop.f32.mrf.mxu0
    %274 = vdwg.mxu0
    %275 = vmatprep.subr.mxu0 0.0
    %276 = vmatpush1.msra.mxu0 0.0
    %277 = vmatprep.subr.mxu0 0.0
    %278 = vmatpush1.msra.mxu0 0.0
    %279 = vmatprep.subr.mxu0 0.0
    %280 = vmatpush1.msra.mxu0 0.0
    %281 = vmatprep.subr.mxu0 0.0
    %282 = vmatpush1.msra.mxu0 0.0
    %283 = vmatprep.subr.mxu0 0.0
    %284 = vmatpush1.msra.mxu0 0.0
    %285 = vmatprep.subr.mxu0 0.0
    %286 = vmatpush1.msra.mxu0 0.0
    %287 = vmatprep.subr.mxu0 0.0
    %288 = vmatpush1.msra.mxu0 0.0
    %289 = vmatprep.subr.mxu0 0.0
    %290 = vmatpush1.msra.mxu0 0.0
    %291 = vmatprep.subr.mxu0 0.0
    %292 = vmatpush1.msra.mxu0 0.0
    %293 = vmatprep.subr.mxu0 0.0
    %294 = vmatpush1.msra.mxu0 0.0
    %295 = vmatprep.subr.mxu0 0.0
    %296 = vmatpush1.msra.mxu0 0.0
    %297 = vmatprep.subr.mxu0 0.0
    %298 = vmatpush1.msra.mxu0 0.0
    %299 = vmatprep.subr.mxu0 0.0
    %300 = vmatpush1.msra.mxu0 %v42
    %301 = vmatprep.subr.mxu0 0.0
    %302 = vmatpush1.msra.mxu0 %v41
    %303 = vmatprep.subr.mxu0 0.0
    %304 = vmatpush1.msra.mxu0 %v40
    %305 = vmatprep.subr.mxu0 0.0
    %306 = vmatpush1.msra.mxu0 %v39
    %307 = vmatprep.subr.mxu0 0.0
    %308 = vmatpush2.msra.mxu0 0.0
    %309 = vmatprep.subr.mxu0 0.0
    %310 = vmatpush2.msra.mxu0 0.0
    %311 = vmatprep.subr.mxu0 0.0
    %312 = vmatpush2.msra.mxu0 0.0
    %313 = vmatprep.subr.mxu0 0.0
    %314 = vmatpush2.msra.mxu0 0.0
    %315 = vmatprep.subr.mxu0 0.0
    %316 = vmatpush2.msra.mxu0 0.0
    %317 = vmatprep.subr.mxu0 0.0
    %318 = vmatpush2.msra.mxu0 0.0
    %319 = vmatprep.subr.mxu0 0.0
    %320 = vmatpush2.msra.mxu0 0.0
    %321 = vmatprep.subr.mxu0 0.0
    %322 = vmatpush2.msra.mxu0 0.0
    %323 = vmatprep.subr.mxu0 0.0
    %324 = vmatpush2.msra.mxu0 0.0
    %325 = vmatprep.subr.mxu0 0.0
    %326 = vmatpush2.msra.mxu0 0.0
    %327 = vmatprep.subr.mxu0 0.0
    %328 = vmatpush2.msra.mxu0 0.0
    %329 = vmatprep.subr.mxu0 0.0
    %330 = vmatpush2.msra.mxu0 0.0
    %331 = vmatprep.subr.mxu0 0.0
    %332 = vmatpush2.msra.mxu0 0.0
    %333 = vmatprep.subr.mxu0 0.0
    %334 = vmatpush2.msra.mxu0 0.0
    %335 = vmatprep.subr.mxu0 0.0
    %336 = vmatpush2.msra.mxu0 0.0
    %337 = vmatprep.subr.mxu0 0.0
    %338 = vmatpush2.msra.mxu0 0.0
    %339 = vmatprep.mubr.f32.mxu0 0.0
    %340 = vmatmul.mubr.f32.gmra.mxu0 %v45
    %v341 = vpop.f32.mrf.mxu0
    %v342 = vadd.f32 0.0, %v341
    %v343 = vpop.f32.mrf.mxu0
    %344 = vmatprep.mubr.f32.mxu0 0.0
    %345 = vmatmul.mubr.f32.gmra.mxu0 %v48
    %v346 = vpop.f32.mrf.mxu0
    %v347 = vadd.f32 0.0, %v346
    %v348 = vpop.f32.mrf.mxu0
    %349 = vdwg.mxu0
    %351 = vrot.lane.b32.xlu0 %v117, 120
    %v352 = vpop.permute.xlu0 %351
    %vm353 = vcmask 64512
    %v354 = vsel %vm353, %v117, 0
    %v356 = vsel %vm353, %v352, 0
    %358 = vmatprep.subr.mxu0 0.0
    %359 = vmatpush1.xpose.msra.mxu0 0.0
    %360 = vmatprep.subr.mxu0 0.0
    %361 = vmatpush1.xpose.msra.mxu0 0.0
    %362 = vmatprep.subr.mxu0 0.0
    %363 = vmatpush1.xpose.msra.mxu0 0.0
    %364 = vmatprep.subr.mxu0 0.0
    %365 = vmatpush1.xpose.msra.mxu0 0.0
    %366 = vmatprep.subr.mxu0 0.0
    %367 = vmatpush1.xpose.msra.mxu0 0.0
    %368 = vmatprep.subr.mxu0 0.0
    %369 = vmatpush1.xpose.msra.mxu0 0.0
    %370 = vmatprep.subr.mxu0 0.0
    %371 = vmatpush1.xpose.msra.mxu0 0.0
    %372 = vmatprep.subr.mxu0 0.0
    %373 = vmatpush1.xpose.msra.mxu0 0.0
    %374 = vmatprep.subr.mxu0 0.0
    %375 = vmatpush1.xpose.msra.mxu0 0.0
    %376 = vmatprep.subr.mxu0 0.0
    %377 = vmatpush1.xpose.msra.mxu0 0.0
    %378 = vmatprep.subr.mxu0 0.0
    %379 = vmatpush1.xpose.msra.mxu0 0.0
    %380 = vmatprep.subr.mxu0 0.0
    %381 = vmatpush1.xpose.msra.mxu0 0.0
    %382 = vmatprep.subr.mxu0 0.0
    %383 = vmatpush1.xpose.msra.mxu0 0.0
    %384 = vmatprep.subr.mxu0 0.0
    %385 = vmatpush1.xpose.msra.mxu0 0.0
    %386 = vmatprep.subr.mxu0 0.0
    %387 = vmatpush1.xpose.msra.mxu0 0.0
    %388 = vmatprep.subr.mxu0 0.0
    %389 = vmatpush1.xpose.msra.mxu0 %v356
    %390 = vmatprep.subr.mxu0 0.0
    %391 = vmatpush2.xpose.msra.mxu0 0.0
    %392 = vmatprep.subr.mxu0 0.0
    %393 = vmatpush2.xpose.msra.mxu0 0.0
    %394 = vmatprep.subr.mxu0 0.0
    %395 = vmatpush2.xpose.msra.mxu0 0.0
    %396 = vmatprep.subr.mxu0 0.0
    %397 = vmatpush2.xpose.msra.mxu0 0.0
    %398 = vmatprep.subr.mxu0 0.0
    %399 = vmatpush2.xpose.msra.mxu0 0.0
    %400 = vmatprep.subr.mxu0 0.0
    %401 = vmatpush2.xpose.msra.mxu0 0.0
    %402 = vmatprep.subr.mxu0 0.0
    %403 = vmatpush2.xpose.msra.mxu0 0.0
    %404 = vmatprep.subr.mxu0 0.0
    %405 = vmatpush2.xpose.msra.mxu0 0.0
    %406 = vmatprep.subr.mxu0 0.0
    %407 = vmatpush2.xpose.msra.mxu0 0.0
    %408 = vmatprep.subr.mxu0 0.0
    %409 = vmatpush2.xpose.msra.mxu0 0.0
    %410 = vmatprep.subr.mxu0 0.0
    %411 = vmatpush2.xpose.msra.mxu0 0.0
    %412 = vmatprep.subr.mxu0 0.0
    %413 = vmatpush2.xpose.msra.mxu0 0.0
    %414 = vmatprep.subr.mxu0 0.0
    %415 = vmatpush2.xpose.msra.mxu0 0.0
    %416 = vmatprep.subr.mxu0 0.0
    %417 = vmatpush2.xpose.msra.mxu0 0.0
    %418 = vmatprep.subr.mxu0 0.0
    %419 = vmatpush2.xpose.msra.mxu0 0.0
    %420 = vmatprep.subr.mxu0 0.0
    %421 = vmatpush2.xpose.msra.mxu0 0.0
    %422 = vmatprep.mubr.f32.mxu0 0.0
    %423 = vmatmul.mubr.f32.gmra.mxu0 %v354
    %v424 = vpop.f32.mrf.mxu0
    %v425 = vadd.f32 0.0, %v424
    %v426 = vpop.f32.mrf.mxu0
    %427 = vdwg.mxu0
    %429 = vrot.lane.b32.xlu0 %v122, 120
    %v430 = vpop.permute.xlu0 %429
    %v431 = vsel %vm353, %v122, 0
    %v433 = vsel %vm353, %v430, 0
    %435 = vmatprep.subr.mxu0 0.0
    %436 = vmatpush1.xpose.msra.mxu0 0.0
    %437 = vmatprep.subr.mxu0 0.0
    %438 = vmatpush1.xpose.msra.mxu0 0.0
    %439 = vmatprep.subr.mxu0 0.0
    %440 = vmatpush1.xpose.msra.mxu0 0.0
    %441 = vmatprep.subr.mxu0 0.0
    %442 = vmatpush1.xpose.msra.mxu0 0.0
    %443 = vmatprep.subr.mxu0 0.0
    %444 = vmatpush1.xpose.msra.mxu0 0.0
    %445 = vmatprep.subr.mxu0 0.0
    %446 = vmatpush1.xpose.msra.mxu0 0.0
    %447 = vmatprep.subr.mxu0 0.0
    %448 = vmatpush1.xpose.msra.mxu0 0.0
    %449 = vmatprep.subr.mxu0 0.0
    %450 = vmatpush1.xpose.msra.mxu0 0.0
    %451 = vmatprep.subr.mxu0 0.0
    %452 = vmatpush1.xpose.msra.mxu0 0.0
    %453 = vmatprep.subr.mxu0 0.0
    %454 = vmatpush1.xpose.msra.mxu0 0.0
    %455 = vmatprep.subr.mxu0 0.0
    %456 = vmatpush1.xpose.msra.mxu0 0.0
    %457 = vmatprep.subr.mxu0 0.0
    %458 = vmatpush1.xpose.msra.mxu0 0.0
    %459 = vmatprep.subr.mxu0 0.0
    %460 = vmatpush1.xpose.msra.mxu0 0.0
    %461 = vmatprep.subr.mxu0 0.0
    %462 = vmatpush1.xpose.msra.mxu0 0.0
    %463 = vmatprep.subr.mxu0 0.0
    %464 = vmatpush1.xpose.msra.mxu0 0.0
    %465 = vmatprep.subr.mxu0 0.0
    %466 = vmatpush1.xpose.msra.mxu0 %v433
    %467 = vmatprep.subr.mxu0 0.0
    %468 = vmatpush2.xpose.msra.mxu0 0.0
    %469 = vmatprep.subr.mxu0 0.0
    %470 = vmatpush2.xpose.msra.mxu0 0.0
    %471 = vmatprep.subr.mxu0 0.0
    %472 = vmatpush2.xpose.msra.mxu0 0.0
    %473 = vmatprep.subr.mxu0 0.0
    %474 = vmatpush2.xpose.msra.mxu0 0.0
    %475 = vmatprep.subr.mxu0 0.0
    %476 = vmatpush2.xpose.msra.mxu0 0.0
    %477 = vmatprep.subr.mxu0 0.0
    %478 = vmatpush2.xpose.msra.mxu0 0.0
    %479 = vmatprep.subr.mxu0 0.0
    %480 = vmatpush2.xpose.msra.mxu0 0.0
    %481 = vmatprep.subr.mxu0 0.0
    %482 = vmatpush2.xpose.msra.mxu0 0.0
    %483 = vmatprep.subr.mxu0 0.0
    %484 = vmatpush2.xpose.msra.mxu0 0.0
    %485 = vmatprep.subr.mxu0 0.0
    %486 = vmatpush2.xpose.msra.mxu0 0.0
    %487 = vmatprep.subr.mxu0 0.0
    %488 = vmatpush2.xpose.msra.mxu0 0.0
    %489 = vmatprep.subr.mxu0 0.0
    %490 = vmatpush2.xpose.msra.mxu0 0.0
    %491 = vmatprep.subr.mxu0 0.0
    %492 = vmatpush2.xpose.msra.mxu0 0.0
    %493 = vmatprep.subr.mxu0 0.0
    %494 = vmatpush2.xpose.msra.mxu0 0.0
    %495 = vmatprep.subr.mxu0 0.0
    %496 = vmatpush2.xpose.msra.mxu0 0.0
    %497 = vmatprep.subr.mxu0 0.0
    %498 = vmatpush2.xpose.msra.mxu0 0.0
    %499 = vmatprep.mubr.f32.mxu0 0.0
    %500 = vmatmul.mubr.f32.gmra.mxu0 %v431
    %v501 = vpop.f32.mrf.mxu0
    %v502 = vadd.f32 0.0, %v501
    %v503 = vpop.f32.mrf.mxu0
    %504 = vdwg.mxu0
    %506 = vrot.lane.b32.xlu0 %v192, 120
    %v507 = vpop.permute.xlu0 %506
    %v508 = vsel %vm353, %v192, 0
    %v510 = vsel %vm353, %v507, 0
    %512 = vmatprep.subr.mxu0 0.0
    %513 = vmatpush1.xpose.msra.mxu0 0.0
    %514 = vmatprep.subr.mxu0 0.0
    %515 = vmatpush1.xpose.msra.mxu0 0.0
    %516 = vmatprep.subr.mxu0 0.0
    %517 = vmatpush1.xpose.msra.mxu0 0.0
    %518 = vmatprep.subr.mxu0 0.0
    %519 = vmatpush1.xpose.msra.mxu0 0.0
    %520 = vmatprep.subr.mxu0 0.0
    %521 = vmatpush1.xpose.msra.mxu0 0.0
    %522 = vmatprep.subr.mxu0 0.0
    %523 = vmatpush1.xpose.msra.mxu0 0.0
    %524 = vmatprep.subr.mxu0 0.0
    %525 = vmatpush1.xpose.msra.mxu0 0.0
    %526 = vmatprep.subr.mxu0 0.0
    %527 = vmatpush1.xpose.msra.mxu0 0.0
    %528 = vmatprep.subr.mxu0 0.0
    %529 = vmatpush1.xpose.msra.mxu0 0.0
    %530 = vmatprep.subr.mxu0 0.0
    %531 = vmatpush1.xpose.msra.mxu0 0.0
    %532 = vmatprep.subr.mxu0 0.0
    %533 = vmatpush1.xpose.msra.mxu0 0.0
    %534 = vmatprep.subr.mxu0 0.0
    %535 = vmatpush1.xpose.msra.mxu0 0.0
    %536 = vmatprep.subr.mxu0 0.0
    %537 = vmatpush1.xpose.msra.mxu0 0.0
    %538 = vmatprep.subr.mxu0 0.0
    %539 = vmatpush1.xpose.msra.mxu0 0.0
    %540 = vmatprep.subr.mxu0 0.0
    %541 = vmatpush1.xpose.msra.mxu0 0.0
    %542 = vmatprep.subr.mxu0 0.0
    %543 = vmatpush1.xpose.msra.mxu0 %v510
    %544 = vmatprep.subr.mxu0 0.0
    %545 = vmatpush2.xpose.msra.mxu0 0.0
    %546 = vmatprep.subr.mxu0 0.0
    %547 = vmatpush2.xpose.msra.mxu0 0.0
    %548 = vmatprep.subr.mxu0 0.0
    %549 = vmatpush2.xpose.msra.mxu0 0.0
    %550 = vmatprep.subr.mxu0 0.0
    %551 = vmatpush2.xpose.msra.mxu0 0.0
    %552 = vmatprep.subr.mxu0 0.0
    %553 = vmatpush2.xpose.msra.mxu0 0.0
    %554 = vmatprep.subr.mxu0 0.0
    %555 = vmatpush2.xpose.msra.mxu0 0.0
    %556 = vmatprep.subr.mxu0 0.0
    %557 = vmatpush2.xpose.msra.mxu0 0.0
    %558 = vmatprep.subr.mxu0 0.0
    %559 = vmatpush2.xpose.msra.mxu0 0.0
    %560 = vmatprep.subr.mxu0 0.0
    %561 = vmatpush2.xpose.msra.mxu0 0.0
    %562 = vmatprep.subr.mxu0 0.0
    %563 = vmatpush2.xpose.msra.mxu0 0.0
    %564 = vmatprep.subr.mxu0 0.0
    %565 = vmatpush2.xpose.msra.mxu0 0.0
    %566 = vmatprep.subr.mxu0 0.0
    %567 = vmatpush2.xpose.msra.mxu0 0.0
    %568 = vmatprep.subr.mxu0 0.0
    %569 = vmatpush2.xpose.msra.mxu0 0.0
    %570 = vmatprep.subr.mxu0 0.0
    %571 = vmatpush2.xpose.msra.mxu0 0.0
    %572 = vmatprep.subr.mxu0 0.0
    %573 = vmatpush2.xpose.msra.mxu0 0.0
    %574 = vmatprep.subr.mxu0 0.0
    %575 = vmatpush2.xpose.msra.mxu0 0.0
    %576 = vmatprep.mubr.f32.mxu0 0.0
    %577 = vmatmul.mubr.f32.gmra.mxu0 %v508
    %v578 = vpop.f32.mrf.mxu0
    %v579 = vadd.f32 0.0, %v578
    %v580 = vpop.f32.mrf.mxu0
    %581 = vdwg.mxu0
    %583 = vrot.lane.b32.xlu0 %v197, 120
    %v584 = vpop.permute.xlu0 %583
    %v585 = vsel %vm353, %v197, 0
    %v587 = vsel %vm353, %v584, 0
    %589 = vmatprep.subr.mxu0 0.0
    %590 = vmatpush1.xpose.msra.mxu0 0.0
    %591 = vmatprep.subr.mxu0 0.0
    %592 = vmatpush1.xpose.msra.mxu0 0.0
    %593 = vmatprep.subr.mxu0 0.0
    %594 = vmatpush1.xpose.msra.mxu0 0.0
    %595 = vmatprep.subr.mxu0 0.0
    %596 = vmatpush1.xpose.msra.mxu0 0.0
    %597 = vmatprep.subr.mxu0 0.0
    %598 = vmatpush1.xpose.msra.mxu0 0.0
    %599 = vmatprep.subr.mxu0 0.0
    %600 = vmatpush1.xpose.msra.mxu0 0.0
    %601 = vmatprep.subr.mxu0 0.0
    %602 = vmatpush1.xpose.msra.mxu0 0.0
    %603 = vmatprep.subr.mxu0 0.0
    %604 = vmatpush1.xpose.msra.mxu0 0.0
    %605 = vmatprep.subr.mxu0 0.0
    %606 = vmatpush1.xpose.msra.mxu0 0.0
    %607 = vmatprep.subr.mxu0 0.0
    %608 = vmatpush1.xpose.msra.mxu0 0.0
    %609 = vmatprep.subr.mxu0 0.0
    %610 = vmatpush1.xpose.msra.mxu0 0.0
    %611 = vmatprep.subr.mxu0 0.0
    %612 = vmatpush1.xpose.msra.mxu0 0.0
    %613 = vmatprep.subr.mxu0 0.0
    %614 = vmatpush1.xpose.msra.mxu0 0.0
    %615 = vmatprep.subr.mxu0 0.0
    %616 = vmatpush1.xpose.msra.mxu0 0.0
    %617 = vmatprep.subr.mxu0 0.0
    %618 = vmatpush1.xpose.msra.mxu0 0.0
    %619 = vmatprep.subr.mxu0 0.0
    %620 = vmatpush1.xpose.msra.mxu0 %v587
    %621 = vmatprep.subr.mxu0 0.0
    %622 = vmatpush2.xpose.msra.mxu0 0.0
    %623 = vmatprep.subr.mxu0 0.0
    %624 = vmatpush2.xpose.msra.mxu0 0.0
    %625 = vmatprep.subr.mxu0 0.0
    %626 = vmatpush2.xpose.msra.mxu0 0.0
    %627 = vmatprep.subr.mxu0 0.0
    %628 = vmatpush2.xpose.msra.mxu0 0.0
    %629 = vmatprep.subr.mxu0 0.0
    %630 = vmatpush2.xpose.msra.mxu0 0.0
    %631 = vmatprep.subr.mxu0 0.0
    %632 = vmatpush2.xpose.msra.mxu0 0.0
    %633 = vmatprep.subr.mxu0 0.0
    %634 = vmatpush2.xpose.msra.mxu0 0.0
    %635 = vmatprep.subr.mxu0 0.0
    %636 = vmatpush2.xpose.msra.mxu0 0.0
    %637 = vmatprep.subr.mxu0 0.0
    %638 = vmatpush2.xpose.msra.mxu0 0.0
    %639 = vmatprep.subr.mxu0 0.0
    %640 = vmatpush2.xpose.msra.mxu0 0.0
    %641 = vmatprep.subr.mxu0 0.0
    %642 = vmatpush2.xpose.msra.mxu0 0.0
    %643 = vmatprep.subr.mxu0 0.0
    %644 = vmatpush2.xpose.msra.mxu0 0.0
    %645 = vmatprep.subr.mxu0 0.0
    %646 = vmatpush2.xpose.msra.mxu0 0.0
    %647 = vmatprep.subr.mxu0 0.0
    %648 = vmatpush2.xpose.msra.mxu0 0.0
    %649 = vmatprep.subr.mxu0 0.0
    %650 = vmatpush2.xpose.msra.mxu0 0.0
    %651 = vmatprep.subr.mxu0 0.0
    %652 = vmatpush2.xpose.msra.mxu0 0.0
    %653 = vmatprep.mubr.f32.mxu0 0.0
    %654 = vmatmul.mubr.f32.gmra.mxu0 %v585
    %v655 = vpop.f32.mrf.mxu0
    %v656 = vadd.f32 0.0, %v655
    %v657 = vpop.f32.mrf.mxu0
    %658 = vdwg.mxu0
    %660 = vrot.lane.b32.xlu0 %v267, 120
    %v661 = vpop.permute.xlu0 %660
    %v662 = vsel %vm353, %v267, 0
    %v664 = vsel %vm353, %v661, 0
    %666 = vmatprep.subr.mxu0 0.0
    %667 = vmatpush1.xpose.msra.mxu0 0.0
    %668 = vmatprep.subr.mxu0 0.0
    %669 = vmatpush1.xpose.msra.mxu0 0.0
    %670 = vmatprep.subr.mxu0 0.0
    %671 = vmatpush1.xpose.msra.mxu0 0.0
    %672 = vmatprep.subr.mxu0 0.0
    %673 = vmatpush1.xpose.msra.mxu0 0.0
    %674 = vmatprep.subr.mxu0 0.0
    %675 = vmatpush1.xpose.msra.mxu0 0.0
    %676 = vmatprep.subr.mxu0 0.0
    %677 = vmatpush1.xpose.msra.mxu0 0.0
    %678 = vmatprep.subr.mxu0 0.0
    %679 = vmatpush1.xpose.msra.mxu0 0.0
    %680 = vmatprep.subr.mxu0 0.0
    %681 = vmatpush1.xpose.msra.mxu0 0.0
    %682 = vmatprep.subr.mxu0 0.0
    %683 = vmatpush1.xpose.msra.mxu0 0.0
    %684 = vmatprep.subr.mxu0 0.0
    %685 = vmatpush1.xpose.msra.mxu0 0.0
    %686 = vmatprep.subr.mxu0 0.0
    %687 = vmatpush1.xpose.msra.mxu0 0.0
    %688 = vmatprep.subr.mxu0 0.0
    %689 = vmatpush1.xpose.msra.mxu0 0.0
    %690 = vmatprep.subr.mxu0 0.0
    %691 = vmatpush1.xpose.msra.mxu0 0.0
    %692 = vmatprep.subr.mxu0 0.0
    %693 = vmatpush1.xpose.msra.mxu0 0.0
    %694 = vmatprep.subr.mxu0 0.0
    %695 = vmatpush1.xpose.msra.mxu0 0.0
    %696 = vmatprep.subr.mxu0 0.0
    %697 = vmatpush1.xpose.msra.mxu0 %v664
    %698 = vmatprep.subr.mxu0 0.0
    %699 = vmatpush2.xpose.msra.mxu0 0.0
    %700 = vmatprep.subr.mxu0 0.0
    %701 = vmatpush2.xpose.msra.mxu0 0.0
    %702 = vmatprep.subr.mxu0 0.0
    %703 = vmatpush2.xpose.msra.mxu0 0.0
    %704 = vmatprep.subr.mxu0 0.0
    %705 = vmatpush2.xpose.msra.mxu0 0.0
    %706 = vmatprep.subr.mxu0 0.0
    %707 = vmatpush2.xpose.msra.mxu0 0.0
    %708 = vmatprep.subr.mxu0 0.0
    %709 = vmatpush2.xpose.msra.mxu0 0.0
    %710 = vmatprep.subr.mxu0 0.0
    %711 = vmatpush2.xpose.msra.mxu0 0.0
    %712 = vmatprep.subr.mxu0 0.0
    %713 = vmatpush2.xpose.msra.mxu0 0.0
    %714 = vmatprep.subr.mxu0 0.0
    %715 = vmatpush2.xpose.msra.mxu0 0.0
    %716 = vmatprep.subr.mxu0 0.0
    %717 = vmatpush2.xpose.msra.mxu0 0.0
    %718 = vmatprep.subr.mxu0 0.0
    %719 = vmatpush2.xpose.msra.mxu0 0.0
    %720 = vmatprep.subr.mxu0 0.0
    %721 = vmatpush2.xpose.msra.mxu0 0.0
    %722 = vmatprep.subr.mxu0 0.0
    %723 = vmatpush2.xpose.msra.mxu0 0.0
    %724 = vmatprep.subr.mxu0 0.0
    %725 = vmatpush2.xpose.msra.mxu0 0.0
    %726 = vmatprep.subr.mxu0 0.0
    %727 = vmatpush2.xpose.msra.mxu0 0.0
    %728 = vmatprep.subr.mxu0 0.0
    %729 = vmatpush2.xpose.msra.mxu0 0.0
    %730 = vmatprep.mubr.f32.mxu0 0.0
    %731 = vmatmul.mubr.f32.gmra.mxu0 %v662
    %v732 = vpop.f32.mrf.mxu0
    %v733 = vadd.f32 0.0, %v732
    %v734 = vpop.f32.mrf.mxu0
    %735 = vdwg.mxu0
    %737 = vrot.lane.b32.xlu0 %v272, 120
    %v738 = vpop.permute.xlu0 %737
    %v739 = vsel %vm353, %v272, 0
    %v741 = vsel %vm353, %v738, 0
    %743 = vmatprep.subr.mxu0 0.0
    %744 = vmatpush1.xpose.msra.mxu0 0.0
    %745 = vmatprep.subr.mxu0 0.0
    %746 = vmatpush1.xpose.msra.mxu0 0.0
    %747 = vmatprep.subr.mxu0 0.0
    %748 = vmatpush1.xpose.msra.mxu0 0.0
    %749 = vmatprep.subr.mxu0 0.0
    %750 = vmatpush1.xpose.msra.mxu0 0.0
    %751 = vmatprep.subr.mxu0 0.0
    %752 = vmatpush1.xpose.msra.mxu0 0.0
    %753 = vmatprep.subr.mxu0 0.0
    %754 = vmatpush1.xpose.msra.mxu0 0.0
    %755 = vmatprep.subr.mxu0 0.0
    %756 = vmatpush1.xpose.msra.mxu0 0.0
    %757 = vmatprep.subr.mxu0 0.0
    %758 = vmatpush1.xpose.msra.mxu0 0.0
    %759 = vmatprep.subr.mxu0 0.0
    %760 = vmatpush1.xpose.msra.mxu0 0.0
    %761 = vmatprep.subr.mxu0 0.0
    %762 = vmatpush1.xpose.msra.mxu0 0.0
    %763 = vmatprep.subr.mxu0 0.0
    %764 = vmatpush1.xpose.msra.mxu0 0.0
    %765 = vmatprep.subr.mxu0 0.0
    %766 = vmatpush1.xpose.msra.mxu0 0.0
    %767 = vmatprep.subr.mxu0 0.0
    %768 = vmatpush1.xpose.msra.mxu0 0.0
    %769 = vmatprep.subr.mxu0 0.0
    %770 = vmatpush1.xpose.msra.mxu0 0.0
    %771 = vmatprep.subr.mxu0 0.0
    %772 = vmatpush1.xpose.msra.mxu0 0.0
    %773 = vmatprep.subr.mxu0 0.0
    %774 = vmatpush1.xpose.msra.mxu0 %v741
    %775 = vmatprep.subr.mxu0 0.0
    %776 = vmatpush2.xpose.msra.mxu0 0.0
    %777 = vmatprep.subr.mxu0 0.0
    %778 = vmatpush2.xpose.msra.mxu0 0.0
    %779 = vmatprep.subr.mxu0 0.0
    %780 = vmatpush2.xpose.msra.mxu0 0.0
    %781 = vmatprep.subr.mxu0 0.0
    %782 = vmatpush2.xpose.msra.mxu0 0.0
    %783 = vmatprep.subr.mxu0 0.0
    %784 = vmatpush2.xpose.msra.mxu0 0.0
    %785 = vmatprep.subr.mxu0 0.0
    %786 = vmatpush2.xpose.msra.mxu0 0.0
    %787 = vmatprep.subr.mxu0 0.0
    %788 = vmatpush2.xpose.msra.mxu0 0.0
    %789 = vmatprep.subr.mxu0 0.0
    %790 = vmatpush2.xpose.msra.mxu0 0.0
    %791 = vmatprep.subr.mxu0 0.0
    %792 = vmatpush2.xpose.msra.mxu0 0.0
    %793 = vmatprep.subr.mxu0 0.0
    %794 = vmatpush2.xpose.msra.mxu0 0.0
    %795 = vmatprep.subr.mxu0 0.0
    %796 = vmatpush2.xpose.msra.mxu0 0.0
    %797 = vmatprep.subr.mxu0 0.0
    %798 = vmatpush2.xpose.msra.mxu0 0.0
    %799 = vmatprep.subr.mxu0 0.0
    %800 = vmatpush2.xpose.msra.mxu0 0.0
    %801 = vmatprep.subr.mxu0 0.0
    %802 = vmatpush2.xpose.msra.mxu0 0.0
    %803 = vmatprep.subr.mxu0 0.0
    %804 = vmatpush2.xpose.msra.mxu0 0.0
    %805 = vmatprep.subr.mxu0 0.0
    %806 = vmatpush2.xpose.msra.mxu0 0.0
    %807 = vmatprep.mubr.f32.mxu0 0.0
    %808 = vmatmul.mubr.f32.gmra.mxu0 %v739
    %v809 = vpop.f32.mrf.mxu0
    %v810 = vadd.f32 0.0, %v809
    %v811 = vpop.f32.mrf.mxu0
    %812 = vdwg.mxu0
    %814 = vrot.lane.b32.xlu0 %v342, 120
    %v815 = vpop.permute.xlu0 %814
    %v816 = vsel %vm353, %v342, 0
    %v818 = vsel %vm353, %v815, 0
    %820 = vmatprep.subr.mxu0 0.0
    %821 = vmatpush1.xpose.msra.mxu0 0.0
    %822 = vmatprep.subr.mxu0 0.0
    %823 = vmatpush1.xpose.msra.mxu0 0.0
    %824 = vmatprep.subr.mxu0 0.0
    %825 = vmatpush1.xpose.msra.mxu0 0.0
    %826 = vmatprep.subr.mxu0 0.0
    %827 = vmatpush1.xpose.msra.mxu0 0.0
    %828 = vmatprep.subr.mxu0 0.0
    %829 = vmatpush1.xpose.msra.mxu0 0.0
    %830 = vmatprep.subr.mxu0 0.0
    %831 = vmatpush1.xpose.msra.mxu0 0.0
    %832 = vmatprep.subr.mxu0 0.0
    %833 = vmatpush1.xpose.msra.mxu0 0.0
    %834 = vmatprep.subr.mxu0 0.0
    %835 = vmatpush1.xpose.msra.mxu0 0.0
    %836 = vmatprep.subr.mxu0 0.0
    %837 = vmatpush1.xpose.msra.mxu0 0.0
    %838 = vmatprep.subr.mxu0 0.0
    %839 = vmatpush1.xpose.msra.mxu0 0.0
    %840 = vmatprep.subr.mxu0 0.0
    %841 = vmatpush1.xpose.msra.mxu0 0.0
    %842 = vmatprep.subr.mxu0 0.0
    %843 = vmatpush1.xpose.msra.mxu0 0.0
    %844 = vmatprep.subr.mxu0 0.0
    %845 = vmatpush1.xpose.msra.mxu0 0.0
    %846 = vmatprep.subr.mxu0 0.0
    %847 = vmatpush1.xpose.msra.mxu0 0.0
    %848 = vmatprep.subr.mxu0 0.0
    %849 = vmatpush1.xpose.msra.mxu0 0.0
    %850 = vmatprep.subr.mxu0 0.0
    %851 = vmatpush1.xpose.msra.mxu0 %v818
    %852 = vmatprep.subr.mxu0 0.0
    %853 = vmatpush2.xpose.msra.mxu0 0.0
    %854 = vmatprep.subr.mxu0 0.0
    %855 = vmatpush2.xpose.msra.mxu0 0.0
    %856 = vmatprep.subr.mxu0 0.0
    %857 = vmatpush2.xpose.msra.mxu0 0.0
    %858 = vmatprep.subr.mxu0 0.0
    %859 = vmatpush2.xpose.msra.mxu0 0.0
    %860 = vmatprep.subr.mxu0 0.0
    %861 = vmatpush2.xpose.msra.mxu0 0.0
    %862 = vmatprep.subr.mxu0 0.0
    %863 = vmatpush2.xpose.msra.mxu0 0.0
    %864 = vmatprep.subr.mxu0 0.0
    %865 = vmatpush2.xpose.msra.mxu0 0.0
    %866 = vmatprep.subr.mxu0 0.0
    %867 = vmatpush2.xpose.msra.mxu0 0.0
    %868 = vmatprep.subr.mxu0 0.0
    %869 = vmatpush2.xpose.msra.mxu0 0.0
    %870 = vmatprep.subr.mxu0 0.0
    %871 = vmatpush2.xpose.msra.mxu0 0.0
    %872 = vmatprep.subr.mxu0 0.0
    %873 = vmatpush2.xpose.msra.mxu0 0.0
    %874 = vmatprep.subr.mxu0 0.0
    %875 = vmatpush2.xpose.msra.mxu0 0.0
    %876 = vmatprep.subr.mxu0 0.0
    %877 = vmatpush2.xpose.msra.mxu0 0.0
    %878 = vmatprep.subr.mxu0 0.0
    %879 = vmatpush2.xpose.msra.mxu0 0.0
    %880 = vmatprep.subr.mxu0 0.0
    %881 = vmatpush2.xpose.msra.mxu0 0.0
    %882 = vmatprep.subr.mxu0 0.0
    %883 = vmatpush2.xpose.msra.mxu0 0.0
    %884 = vmatprep.mubr.f32.mxu0 0.0
    %885 = vmatmul.mubr.f32.gmra.mxu0 %v816
    %v886 = vpop.f32.mrf.mxu0
    %v887 = vadd.f32 0.0, %v886
    %v888 = vpop.f32.mrf.mxu0
    %889 = vdwg.mxu0
    %891 = vrot.lane.b32.xlu0 %v347, 120
    %v892 = vpop.permute.xlu0 %891
    %v893 = vsel %vm353, %v347, 0
    %v895 = vsel %vm353, %v892, 0
    %897 = vmatprep.subr.mxu0 0.0
    %898 = vmatpush1.xpose.msra.mxu0 0.0
    %899 = vmatprep.subr.mxu0 0.0
    %900 = vmatpush1.xpose.msra.mxu0 0.0
    %901 = vmatprep.subr.mxu0 0.0
    %902 = vmatpush1.xpose.msra.mxu0 0.0
    %903 = vmatprep.subr.mxu0 0.0
    %904 = vmatpush1.xpose.msra.mxu0 0.0
    %905 = vmatprep.subr.mxu0 0.0
    %906 = vmatpush1.xpose.msra.mxu0 0.0
    %907 = vmatprep.subr.mxu0 0.0
    %908 = vmatpush1.xpose.msra.mxu0 0.0
    %909 = vmatprep.subr.mxu0 0.0
    %910 = vmatpush1.xpose.msra.mxu0 0.0
    %911 = vmatprep.subr.mxu0 0.0
    %912 = vmatpush1.xpose.msra.mxu0 0.0
    %913 = vmatprep.subr.mxu0 0.0
    %914 = vmatpush1.xpose.msra.mxu0 0.0
    %915 = vmatprep.subr.mxu0 0.0
    %916 = vmatpush1.xpose.msra.mxu0 0.0
    %917 = vmatprep.subr.mxu0 0.0
    %918 = vmatpush1.xpose.msra.mxu0 0.0
    %919 = vmatprep.subr.mxu0 0.0
    %920 = vmatpush1.xpose.msra.mxu0 0.0
    %921 = vmatprep.subr.mxu0 0.0
    %922 = vmatpush1.xpose.msra.mxu0 0.0
    %923 = vmatprep.subr.mxu0 0.0
    %924 = vmatpush1.xpose.msra.mxu0 0.0
    %925 = vmatprep.subr.mxu0 0.0
    %926 = vmatpush1.xpose.msra.mxu0 0.0
    %927 = vmatprep.subr.mxu0 0.0
    %928 = vmatpush1.xpose.msra.mxu0 %v895
    %929 = vmatprep.subr.mxu0 0.0
    %930 = vmatpush2.xpose.msra.mxu0 0.0
    %931 = vmatprep.subr.mxu0 0.0
    %932 = vmatpush2.xpose.msra.mxu0 0.0
    %933 = vmatprep.subr.mxu0 0.0
    %934 = vmatpush2.xpose.msra.mxu0 0.0
    %935 = vmatprep.subr.mxu0 0.0
    %936 = vmatpush2.xpose.msra.mxu0 0.0
    %937 = vmatprep.subr.mxu0 0.0
    %938 = vmatpush2.xpose.msra.mxu0 0.0
    %939 = vmatprep.subr.mxu0 0.0
    %940 = vmatpush2.xpose.msra.mxu0 0.0
    %941 = vmatprep.subr.mxu0 0.0
    %942 = vmatpush2.xpose.msra.mxu0 0.0
    %943 = vmatprep.subr.mxu0 0.0
    %944 = vmatpush2.xpose.msra.mxu0 0.0
    %945 = vmatprep.subr.mxu0 0.0
    %946 = vmatpush2.xpose.msra.mxu0 0.0
    %947 = vmatprep.subr.mxu0 0.0
    %948 = vmatpush2.xpose.msra.mxu0 0.0
    %949 = vmatprep.subr.mxu0 0.0
    %950 = vmatpush2.xpose.msra.mxu0 0.0
    %951 = vmatprep.subr.mxu0 0.0
    %952 = vmatpush2.xpose.msra.mxu0 0.0
    %953 = vmatprep.subr.mxu0 0.0
    %954 = vmatpush2.xpose.msra.mxu0 0.0
    %955 = vmatprep.subr.mxu0 0.0
    %956 = vmatpush2.xpose.msra.mxu0 0.0
    %957 = vmatprep.subr.mxu0 0.0
    %958 = vmatpush2.xpose.msra.mxu0 0.0
    %959 = vmatprep.subr.mxu0 0.0
    %960 = vmatpush2.xpose.msra.mxu0 0.0
    %961 = vmatprep.mubr.f32.mxu0 0.0
    %962 = vmatmul.mubr.f32.gmra.mxu0 %v893
    %v963 = vpop.f32.mrf.mxu0
    %v964 = vadd.f32 0.0, %v963
    %v965 = vpop.f32.mrf.mxu0
    %966 = vdwg.mxu0
    %v967 = vsel %vm353, %v425, -inf
    %968 = vmax.xlane.f32.xlu0 %v967
    %v969 = vpop.xlane.xlu0 %968
    %v970 = vsel %vm353, %v502, -inf
    %971 = vmax.xlane.f32.xlu0 %v970
    %v972 = vpop.xlane.xlu0 %971
    %v973 = vsel %vm353, %v579, -inf
    %974 = vmax.xlane.f32.xlu0 %v973
    %v975 = vpop.xlane.xlu0 %974
    %v976 = vsel %vm353, %v656, -inf
    %977 = vmax.xlane.f32.xlu0 %v976
    %v978 = vpop.xlane.xlu0 %977
    %v979 = vsel %vm353, %v733, -inf
    %980 = vmax.xlane.f32.xlu0 %v979
    %v981 = vpop.xlane.xlu0 %980
    %v982 = vsel %vm353, %v810, -inf
    %983 = vmax.xlane.f32.xlu0 %v982
    %v984 = vpop.xlane.xlu0 %983
    %v985 = vsel %vm353, %v887, -inf
    %986 = vmax.xlane.f32.xlu0 %v985
    %v987 = vpop.xlane.xlu0 %986
    %v988 = vsel %vm353, %v964, -inf
    %989 = vmax.xlane.f32.xlu0 %v988
    %v990 = vpop.xlane.xlu0 %989
    %v991 = vsub.f32 %v425, %v969
    %v992 = vsub.f32 %v502, %v972
    %v993 = vsub.f32 %v579, %v975
    %v994 = vsub.f32 %v656, %v978
    %v995 = vsub.f32 %v733, %v981
    %v996 = vsub.f32 %v810, %v984
    %v997 = vsub.f32 %v887, %v987
    %v998 = vsub.f32 %v964, %v990
    %v999 = vmul.f32 %v991, 1.442695
    %v1000 = vpow.pop %v999
    %v1001 = vmul.f32 %v992, 1.442695
    %v1002 = vpow.pop %v1001
    %v1003 = vmul.f32 %v993, 1.442695
    %v1004 = vpow.pop %v1003
    %v1005 = vmul.f32 %v994, 1.442695
    %v1006 = vpow.pop %v1005
    %v1007 = vmul.f32 %v995, 1.442695
    %v1008 = vpow.pop %v1007
    %v1009 = vmul.f32 %v996, 1.442695
    %v1010 = vpow.pop %v1009
    %v1011 = vmul.f32 %v997, 1.442695
    %v1012 = vpow.pop %v1011
    %v1013 = vmul.f32 %v998, 1.442695
    %v1014 = vpow.pop %v1013
    %v1015 = vsel %vm353, %v1000, 0.0
    %1016 = vadd.xlane.f32.xlu0 %v1015
    %v1017 = vpop.xlane.xlu0 %1016
    %v1018 = vsel %vm353, %v1002, 0.0
    %1019 = vadd.xlane.f32.xlu0 %v1018
    %v1020 = vpop.xlane.xlu0 %1019
    %v1021 = vsel %vm353, %v1004, 0.0
    %1022 = vadd.xlane.f32.xlu0 %v1021
    %v1023 = vpop.xlane.xlu0 %1022
    %v1024 = vsel %vm353, %v1006, 0.0
    %1025 = vadd.xlane.f32.xlu0 %v1024
    %v1026 = vpop.xlane.xlu0 %1025
    %v1027 = vsel %vm353, %v1008, 0.0
    %1028 = vadd.xlane.f32.xlu0 %v1027
    %v1029 = vpop.xlane.xlu0 %1028
    %v1030 = vsel %vm353, %v1010, 0.0
    %1031 = vadd.xlane.f32.xlu0 %v1030
    %v1032 = vpop.xlane.xlu0 %1031
    %v1033 = vsel %vm353, %v1012, 0.0
    %1034 = vadd.xlane.f32.xlu0 %v1033
    %v1035 = vpop.xlane.xlu0 %1034
    %v1036 = vsel %vm353, %v1014, 0.0
    %1037 = vadd.xlane.f32.xlu0 %v1036
    %v1038 = vpop.xlane.xlu0 %1037
    %v1039 = vrcp.pop %v1017
    %v1040 = vrcp.pop %v1020
    %v1041 = vrcp.pop %v1023
    %v1042 = vrcp.pop %v1026
    %v1043 = vrcp.pop %v1029
    %v1044 = vrcp.pop %v1032
    %v1045 = vrcp.pop %v1035
    %v1046 = vrcp.pop %v1038
    %v1047 = vmul.f32 %v1000, %v1039
    %v1048 = vmul.f32 %v1002, %v1040
    %v1049 = vmul.f32 %v1004, %v1041
    %v1050 = vmul.f32 %v1006, %v1042
    %v1051 = vmul.f32 %v1008, %v1043
    %v1052 = vmul.f32 %v1010, %v1044
    %v1053 = vmul.f32 %v1012, %v1045
    %v1054 = vmul.f32 %v1014, %v1046
    %1055 = vrot.lane.b32.xlu0 %v117, 112
    %v1056 = vpop.permute.xlu0 %1055
    %v1059 = vsel %vm353, %v1047, 0
    %1061 = vmatprep.subr.mxu0 0.0
    %1062 = vmatpush1.msra.mxu0 0.0
    %1063 = vmatprep.subr.mxu0 0.0
    %1064 = vmatpush1.msra.mxu0 0.0
    %1065 = vmatprep.subr.mxu0 0.0
    %1066 = vmatpush1.msra.mxu0 0.0
    %1067 = vmatprep.subr.mxu0 0.0
    %1068 = vmatpush1.msra.mxu0 0.0
    %1069 = vmatprep.subr.mxu0 0.0
    %1070 = vmatpush1.msra.mxu0 0.0
    %1071 = vmatprep.subr.mxu0 0.0
    %1072 = vmatpush1.msra.mxu0 0.0
    %1073 = vmatprep.subr.mxu0 0.0
    %1074 = vmatpush1.msra.mxu0 0.0
    %1075 = vmatprep.subr.mxu0 0.0
    %1076 = vmatpush1.msra.mxu0 0.0
    %1077 = vmatprep.subr.mxu0 0.0
    %1078 = vmatpush1.msra.mxu0 0.0
    %1079 = vmatprep.subr.mxu0 0.0
    %1080 = vmatpush1.msra.mxu0 0.0
    %1081 = vmatprep.subr.mxu0 0.0
    %1082 = vmatpush1.msra.mxu0 0.0
    %1083 = vmatprep.subr.mxu0 0.0
    %1084 = vmatpush1.msra.mxu0 0.0
    %1085 = vmatprep.subr.mxu0 0.0
    %1086 = vmatpush1.msra.mxu0 0.0
    %1087 = vmatprep.subr.mxu0 0.0
    %1088 = vmatpush1.msra.mxu0 0.0
    %1089 = vmatprep.subr.mxu0 0.0
    %1090 = vmatpush1.msra.mxu0 0.0
    %1091 = vmatprep.subr.mxu0 0.0
    %1092 = vmatpush1.msra.mxu0 %v1056
    %1093 = vmatprep.subr.mxu0 0.0
    %1094 = vmatpush2.msra.mxu0 0.0
    %1095 = vmatprep.subr.mxu0 0.0
    %1096 = vmatpush2.msra.mxu0 0.0
    %1097 = vmatprep.subr.mxu0 0.0
    %1098 = vmatpush2.msra.mxu0 0.0
    %1099 = vmatprep.subr.mxu0 0.0
    %1100 = vmatpush2.msra.mxu0 0.0
    %1101 = vmatprep.subr.mxu0 0.0
    %1102 = vmatpush2.msra.mxu0 0.0
    %1103 = vmatprep.subr.mxu0 0.0
    %1104 = vmatpush2.msra.mxu0 0.0
    %1105 = vmatprep.subr.mxu0 0.0
    %1106 = vmatpush2.msra.mxu0 0.0
    %1107 = vmatprep.subr.mxu0 0.0
    %1108 = vmatpush2.msra.mxu0 0.0
    %1109 = vmatprep.subr.mxu0 0.0
    %1110 = vmatpush2.msra.mxu0 0.0
    %1111 = vmatprep.subr.mxu0 0.0
    %1112 = vmatpush2.msra.mxu0 0.0
    %1113 = vmatprep.subr.mxu0 0.0
    %1114 = vmatpush2.msra.mxu0 0.0
    %1115 = vmatprep.subr.mxu0 0.0
    %1116 = vmatpush2.msra.mxu0 0.0
    %1117 = vmatprep.subr.mxu0 0.0
    %1118 = vmatpush2.msra.mxu0 0.0
    %1119 = vmatprep.subr.mxu0 0.0
    %1120 = vmatpush2.msra.mxu0 0.0
    %1121 = vmatprep.subr.mxu0 0.0
    %1122 = vmatpush2.msra.mxu0 0.0
    %1123 = vmatprep.subr.mxu0 0.0
    %1124 = vmatpush2.msra.mxu0 0.0
    %1125 = vmatprep.mubr.f32.mxu0 0.0
    %1126 = vmatmul.mubr.f32.gmra.mxu0 %v1059
    %v1127 = vpop.f32.mrf.mxu0
    %v1128 = vadd.f32 0.0, %v1127
    %v1129 = vpop.f32.mrf.mxu0
    %1130 = vdwg.mxu0
    %1131 = vrot.lane.b32.xlu0 %v122, 112
    %v1132 = vpop.permute.xlu0 %1131
    %v1135 = vsel %vm353, %v1048, 0
    %1137 = vmatprep.subr.mxu0 0.0
    %1138 = vmatpush1.msra.mxu0 0.0
    %1139 = vmatprep.subr.mxu0 0.0
    %1140 = vmatpush1.msra.mxu0 0.0
    %1141 = vmatprep.subr.mxu0 0.0
    %1142 = vmatpush1.msra.mxu0 0.0
    %1143 = vmatprep.subr.mxu0 0.0
    %1144 = vmatpush1.msra.mxu0 0.0
    %1145 = vmatprep.subr.mxu0 0.0
    %1146 = vmatpush1.msra.mxu0 0.0
    %1147 = vmatprep.subr.mxu0 0.0
    %1148 = vmatpush1.msra.mxu0 0.0
    %1149 = vmatprep.subr.mxu0 0.0
    %1150 = vmatpush1.msra.mxu0 0.0
    %1151 = vmatprep.subr.mxu0 0.0
    %1152 = vmatpush1.msra.mxu0 0.0
    %1153 = vmatprep.subr.mxu0 0.0
    %1154 = vmatpush1.msra.mxu0 0.0
    %1155 = vmatprep.subr.mxu0 0.0
    %1156 = vmatpush1.msra.mxu0 0.0
    %1157 = vmatprep.subr.mxu0 0.0
    %1158 = vmatpush1.msra.mxu0 0.0
    %1159 = vmatprep.subr.mxu0 0.0
    %1160 = vmatpush1.msra.mxu0 0.0
    %1161 = vmatprep.subr.mxu0 0.0
    %1162 = vmatpush1.msra.mxu0 0.0
    %1163 = vmatprep.subr.mxu0 0.0
    %1164 = vmatpush1.msra.mxu0 0.0
    %1165 = vmatprep.subr.mxu0 0.0
    %1166 = vmatpush1.msra.mxu0 0.0
    %1167 = vmatprep.subr.mxu0 0.0
    %1168 = vmatpush1.msra.mxu0 %v1132
    %1169 = vmatprep.subr.mxu0 0.0
    %1170 = vmatpush2.msra.mxu0 0.0
    %1171 = vmatprep.subr.mxu0 0.0
    %1172 = vmatpush2.msra.mxu0 0.0
    %1173 = vmatprep.subr.mxu0 0.0
    %1174 = vmatpush2.msra.mxu0 0.0
    %1175 = vmatprep.subr.mxu0 0.0
    %1176 = vmatpush2.msra.mxu0 0.0
    %1177 = vmatprep.subr.mxu0 0.0
    %1178 = vmatpush2.msra.mxu0 0.0
    %1179 = vmatprep.subr.mxu0 0.0
    %1180 = vmatpush2.msra.mxu0 0.0
    %1181 = vmatprep.subr.mxu0 0.0
    %1182 = vmatpush2.msra.mxu0 0.0
    %1183 = vmatprep.subr.mxu0 0.0
    %1184 = vmatpush2.msra.mxu0 0.0
    %1185 = vmatprep.subr.mxu0 0.0
    %1186 = vmatpush2.msra.mxu0 0.0
    %1187 = vmatprep.subr.mxu0 0.0
    %1188 = vmatpush2.msra.mxu0 0.0
    %1189 = vmatprep.subr.mxu0 0.0
    %1190 = vmatpush2.msra.mxu0 0.0
    %1191 = vmatprep.subr.mxu0 0.0
    %1192 = vmatpush2.msra.mxu0 0.0
    %1193 = vmatprep.subr.mxu0 0.0
    %1194 = vmatpush2.msra.mxu0 0.0
    %1195 = vmatprep.subr.mxu0 0.0
    %1196 = vmatpush2.msra.mxu0 0.0
    %1197 = vmatprep.subr.mxu0 0.0
    %1198 = vmatpush2.msra.mxu0 0.0
    %1199 = vmatprep.subr.mxu0 0.0
    %1200 = vmatpush2.msra.mxu0 0.0
    %1201 = vmatprep.mubr.f32.mxu0 0.0
    %1202 = vmatmul.mubr.f32.gmra.mxu0 %v1135
    %v1203 = vpop.f32.mrf.mxu0
    %v1204 = vadd.f32 0.0, %v1203
    %v1205 = vpop.f32.mrf.mxu0
    %1206 = vdwg.mxu0
    %1207 = vrot.lane.b32.xlu0 %v192, 112
    %v1208 = vpop.permute.xlu0 %1207
    %v1211 = vsel %vm353, %v1049, 0
    %1213 = vmatprep.subr.mxu0 0.0
    %1214 = vmatpush1.msra.mxu0 0.0
    %1215 = vmatprep.subr.mxu0 0.0
    %1216 = vmatpush1.msra.mxu0 0.0
    %1217 = vmatprep.subr.mxu0 0.0
    %1218 = vmatpush1.msra.mxu0 0.0
    %1219 = vmatprep.subr.mxu0 0.0
    %1220 = vmatpush1.msra.mxu0 0.0
    %1221 = vmatprep.subr.mxu0 0.0
    %1222 = vmatpush1.msra.mxu0 0.0
    %1223 = vmatprep.subr.mxu0 0.0
    %1224 = vmatpush1.msra.mxu0 0.0
    %1225 = vmatprep.subr.mxu0 0.0
    %1226 = vmatpush1.msra.mxu0 0.0
    %1227 = vmatprep.subr.mxu0 0.0
    %1228 = vmatpush1.msra.mxu0 0.0
    %1229 = vmatprep.subr.mxu0 0.0
    %1230 = vmatpush1.msra.mxu0 0.0
    %1231 = vmatprep.subr.mxu0 0.0
    %1232 = vmatpush1.msra.mxu0 0.0
    %1233 = vmatprep.subr.mxu0 0.0
    %1234 = vmatpush1.msra.mxu0 0.0
    %1235 = vmatprep.subr.mxu0 0.0
    %1236 = vmatpush1.msra.mxu0 0.0
    %1237 = vmatprep.subr.mxu0 0.0
    %1238 = vmatpush1.msra.mxu0 0.0
    %1239 = vmatprep.subr.mxu0 0.0
    %1240 = vmatpush1.msra.mxu0 0.0
    %1241 = vmatprep.subr.mxu0 0.0
    %1242 = vmatpush1.msra.mxu0 0.0
    %1243 = vmatprep.subr.mxu0 0.0
    %1244 = vmatpush1.msra.mxu0 %v1208
    %1245 = vmatprep.subr.mxu0 0.0
    %1246 = vmatpush2.msra.mxu0 0.0
    %1247 = vmatprep.subr.mxu0 0.0
    %1248 = vmatpush2.msra.mxu0 0.0
    %1249 = vmatprep.subr.mxu0 0.0
    %1250 = vmatpush2.msra.mxu0 0.0
    %1251 = vmatprep.subr.mxu0 0.0
    %1252 = vmatpush2.msra.mxu0 0.0
    %1253 = vmatprep.subr.mxu0 0.0
    %1254 = vmatpush2.msra.mxu0 0.0
    %1255 = vmatprep.subr.mxu0 0.0
    %1256 = vmatpush2.msra.mxu0 0.0
    %1257 = vmatprep.subr.mxu0 0.0
    %1258 = vmatpush2.msra.mxu0 0.0
    %1259 = vmatprep.subr.mxu0 0.0
    %1260 = vmatpush2.msra.mxu0 0.0
    %1261 = vmatprep.subr.mxu0 0.0
    %1262 = vmatpush2.msra.mxu0 0.0
    %1263 = vmatprep.subr.mxu0 0.0
    %1264 = vmatpush2.msra.mxu0 0.0
    %1265 = vmatprep.subr.mxu0 0.0
    %1266 = vmatpush2.msra.mxu0 0.0
    %1267 = vmatprep.subr.mxu0 0.0
    %1268 = vmatpush2.msra.mxu0 0.0
    %1269 = vmatprep.subr.mxu0 0.0
    %1270 = vmatpush2.msra.mxu0 0.0
    %1271 = vmatprep.subr.mxu0 0.0
    %1272 = vmatpush2.msra.mxu0 0.0
    %1273 = vmatprep.subr.mxu0 0.0
    %1274 = vmatpush2.msra.mxu0 0.0
    %1275 = vmatprep.subr.mxu0 0.0
    %1276 = vmatpush2.msra.mxu0 0.0
    %1277 = vmatprep.mubr.f32.mxu0 0.0
    %1278 = vmatmul.mubr.f32.gmra.mxu0 %v1211
    %v1279 = vpop.f32.mrf.mxu0
    %v1280 = vadd.f32 0.0, %v1279
    %v1281 = vpop.f32.mrf.mxu0
    %1282 = vdwg.mxu0
    %1283 = vrot.lane.b32.xlu0 %v197, 112
    %v1284 = vpop.permute.xlu0 %1283
    %v1287 = vsel %vm353, %v1050, 0
    %1289 = vmatprep.subr.mxu0 0.0
    %1290 = vmatpush1.msra.mxu0 0.0
    %1291 = vmatprep.subr.mxu0 0.0
    %1292 = vmatpush1.msra.mxu0 0.0
    %1293 = vmatprep.subr.mxu0 0.0
    %1294 = vmatpush1.msra.mxu0 0.0
    %1295 = vmatprep.subr.mxu0 0.0
    %1296 = vmatpush1.msra.mxu0 0.0
    %1297 = vmatprep.subr.mxu0 0.0
    %1298 = vmatpush1.msra.mxu0 0.0
    %1299 = vmatprep.subr.mxu0 0.0
    %1300 = vmatpush1.msra.mxu0 0.0
    %1301 = vmatprep.subr.mxu0 0.0
    %1302 = vmatpush1.msra.mxu0 0.0
    %1303 = vmatprep.subr.mxu0 0.0
    %1304 = vmatpush1.msra.mxu0 0.0
    %1305 = vmatprep.subr.mxu0 0.0
    %1306 = vmatpush1.msra.mxu0 0.0
    %1307 = vmatprep.subr.mxu0 0.0
    %1308 = vmatpush1.msra.mxu0 0.0
    %1309 = vmatprep.subr.mxu0 0.0
    %1310 = vmatpush1.msra.mxu0 0.0
    %1311 = vmatprep.subr.mxu0 0.0
    %1312 = vmatpush1.msra.mxu0 0.0
    %1313 = vmatprep.subr.mxu0 0.0
    %1314 = vmatpush1.msra.mxu0 0.0
    %1315 = vmatprep.subr.mxu0 0.0
    %1316 = vmatpush1.msra.mxu0 0.0
    %1317 = vmatprep.subr.mxu0 0.0
    %1318 = vmatpush1.msra.mxu0 0.0
    %1319 = vmatprep.subr.mxu0 0.0
    %1320 = vmatpush1.msra.mxu0 %v1284
    %1321 = vmatprep.subr.mxu0 0.0
    %1322 = vmatpush2.msra.mxu0 0.0
    %1323 = vmatprep.subr.mxu0 0.0
    %1324 = vmatpush2.msra.mxu0 0.0
    %1325 = vmatprep.subr.mxu0 0.0
    %1326 = vmatpush2.msra.mxu0 0.0
    %1327 = vmatprep.subr.mxu0 0.0
    %1328 = vmatpush2.msra.mxu0 0.0
    %1329 = vmatprep.subr.mxu0 0.0
    %1330 = vmatpush2.msra.mxu0 0.0
    %1331 = vmatprep.subr.mxu0 0.0
    %1332 = vmatpush2.msra.mxu0 0.0
    %1333 = vmatprep.subr.mxu0 0.0
    %1334 = vmatpush2.msra.mxu0 0.0
    %1335 = vmatprep.subr.mxu0 0.0
    %1336 = vmatpush2.msra.mxu0 0.0
    %1337 = vmatprep.subr.mxu0 0.0
    %1338 = vmatpush2.msra.mxu0 0.0
    %1339 = vmatprep.subr.mxu0 0.0
    %1340 = vmatpush2.msra.mxu0 0.0
    %1341 = vmatprep.subr.mxu0 0.0
    %1342 = vmatpush2.msra.mxu0 0.0
    %1343 = vmatprep.subr.mxu0 0.0
    %1344 = vmatpush2.msra.mxu0 0.0
    %1345 = vmatprep.subr.mxu0 0.0
    %1346 = vmatpush2.msra.mxu0 0.0
    %1347 = vmatprep.subr.mxu0 0.0
    %1348 = vmatpush2.msra.mxu0 0.0
    %1349 = vmatprep.subr.mxu0 0.0
    %1350 = vmatpush2.msra.mxu0 0.0
    %1351 = vmatprep.subr.mxu0 0.0
    %1352 = vmatpush2.msra.mxu0 0.0
    %1353 = vmatprep.mubr.f32.mxu0 0.0
    %1354 = vmatmul.mubr.f32.gmra.mxu0 %v1287
    %v1355 = vpop.f32.mrf.mxu0
    %v1356 = vadd.f32 0.0, %v1355
    %v1357 = vpop.f32.mrf.mxu0
    %1358 = vdwg.mxu0
    %1359 = vrot.lane.b32.xlu0 %v267, 112
    %v1360 = vpop.permute.xlu0 %1359
    %v1363 = vsel %vm353, %v1051, 0
    %1365 = vmatprep.subr.mxu0 0.0
    %1366 = vmatpush1.msra.mxu0 0.0
    %1367 = vmatprep.subr.mxu0 0.0
    %1368 = vmatpush1.msra.mxu0 0.0
    %1369 = vmatprep.subr.mxu0 0.0
    %1370 = vmatpush1.msra.mxu0 0.0
    %1371 = vmatprep.subr.mxu0 0.0
    %1372 = vmatpush1.msra.mxu0 0.0
    %1373 = vmatprep.subr.mxu0 0.0
    %1374 = vmatpush1.msra.mxu0 0.0
    %1375 = vmatprep.subr.mxu0 0.0
    %1376 = vmatpush1.msra.mxu0 0.0
    %1377 = vmatprep.subr.mxu0 0.0
    %1378 = vmatpush1.msra.mxu0 0.0
    %1379 = vmatprep.subr.mxu0 0.0
    %1380 = vmatpush1.msra.mxu0 0.0
    %1381 = vmatprep.subr.mxu0 0.0
    %1382 = vmatpush1.msra.mxu0 0.0
    %1383 = vmatprep.subr.mxu0 0.0
    %1384 = vmatpush1.msra.mxu0 0.0
    %1385 = vmatprep.subr.mxu0 0.0
    %1386 = vmatpush1.msra.mxu0 0.0
    %1387 = vmatprep.subr.mxu0 0.0
    %1388 = vmatpush1.msra.mxu0 0.0
    %1389 = vmatprep.subr.mxu0 0.0
    %1390 = vmatpush1.msra.mxu0 0.0
    %1391 = vmatprep.subr.mxu0 0.0
    %1392 = vmatpush1.msra.mxu0 0.0
    %1393 = vmatprep.subr.mxu0 0.0
    %1394 = vmatpush1.msra.mxu0 0.0
    %1395 = vmatprep.subr.mxu0 0.0
    %1396 = vmatpush1.msra.mxu0 %v1360
    %1397 = vmatprep.subr.mxu0 0.0
    %1398 = vmatpush2.msra.mxu0 0.0
    %1399 = vmatprep.subr.mxu0 0.0
    %1400 = vmatpush2.msra.mxu0 0.0
    %1401 = vmatprep.subr.mxu0 0.0
    %1402 = vmatpush2.msra.mxu0 0.0
    %1403 = vmatprep.subr.mxu0 0.0
    %1404 = vmatpush2.msra.mxu0 0.0
    %1405 = vmatprep.subr.mxu0 0.0
    %1406 = vmatpush2.msra.mxu0 0.0
    %1407 = vmatprep.subr.mxu0 0.0
    %1408 = vmatpush2.msra.mxu0 0.0
    %1409 = vmatprep.subr.mxu0 0.0
    %1410 = vmatpush2.msra.mxu0 0.0
    %1411 = vmatprep.subr.mxu0 0.0
    %1412 = vmatpush2.msra.mxu0 0.0
    %1413 = vmatprep.subr.mxu0 0.0
    %1414 = vmatpush2.msra.mxu0 0.0
    %1415 = vmatprep.subr.mxu0 0.0
    %1416 = vmatpush2.msra.mxu0 0.0
    %1417 = vmatprep.subr.mxu0 0.0
    %1418 = vmatpush2.msra.mxu0 0.0
    %1419 = vmatprep.subr.mxu0 0.0
    %1420 = vmatpush2.msra.mxu0 0.0
    %1421 = vmatprep.subr.mxu0 0.0
    %1422 = vmatpush2.msra.mxu0 0.0
    %1423 = vmatprep.subr.mxu0 0.0
    %1424 = vmatpush2.msra.mxu0 0.0
    %1425 = vmatprep.subr.mxu0 0.0
    %1426 = vmatpush2.msra.mxu0 0.0
    %1427 = vmatprep.subr.mxu0 0.0
    %1428 = vmatpush2.msra.mxu0 0.0
    %1429 = vmatprep.mubr.f32.mxu0 0.0
    %1430 = vmatmul.mubr.f32.gmra.mxu0 %v1363
    %v1431 = vpop.f32.mrf.mxu0
    %v1432 = vadd.f32 0.0, %v1431
    %v1433 = vpop.f32.mrf.mxu0
    %1434 = vdwg.mxu0
    %1435 = vrot.lane.b32.xlu0 %v272, 112
    %v1436 = vpop.permute.xlu0 %1435
    %v1439 = vsel %vm353, %v1052, 0
    %1441 = vmatprep.subr.mxu0 0.0
    %1442 = vmatpush1.msra.mxu0 0.0
    %1443 = vmatprep.subr.mxu0 0.0
    %1444 = vmatpush1.msra.mxu0 0.0
    %1445 = vmatprep.subr.mxu0 0.0
    %1446 = vmatpush1.msra.mxu0 0.0
    %1447 = vmatprep.subr.mxu0 0.0
    %1448 = vmatpush1.msra.mxu0 0.0
    %1449 = vmatprep.subr.mxu0 0.0
    %1450 = vmatpush1.msra.mxu0 0.0
    %1451 = vmatprep.subr.mxu0 0.0
    %1452 = vmatpush1.msra.mxu0 0.0
    %1453 = vmatprep.subr.mxu0 0.0
    %1454 = vmatpush1.msra.mxu0 0.0
    %1455 = vmatprep.subr.mxu0 0.0
    %1456 = vmatpush1.msra.mxu0 0.0
    %1457 = vmatprep.subr.mxu0 0.0
    %1458 = vmatpush1.msra.mxu0 0.0
    %1459 = vmatprep.subr.mxu0 0.0
    %1460 = vmatpush1.msra.mxu0 0.0
    %1461 = vmatprep.subr.mxu0 0.0
    %1462 = vmatpush1.msra.mxu0 0.0
    %1463 = vmatprep.subr.mxu0 0.0
    %1464 = vmatpush1.msra.mxu0 0.0
    %1465 = vmatprep.subr.mxu0 0.0
    %1466 = vmatpush1.msra.mxu0 0.0
    %1467 = vmatprep.subr.mxu0 0.0
    %1468 = vmatpush1.msra.mxu0 0.0
    %1469 = vmatprep.subr.mxu0 0.0
    %1470 = vmatpush1.msra.mxu0 0.0
    %1471 = vmatprep.subr.mxu0 0.0
    %1472 = vmatpush1.msra.mxu0 %v1436
    %1473 = vmatprep.subr.mxu0 0.0
    %1474 = vmatpush2.msra.mxu0 0.0
    %1475 = vmatprep.subr.mxu0 0.0
    %1476 = vmatpush2.msra.mxu0 0.0
    %1477 = vmatprep.subr.mxu0 0.0
    %1478 = vmatpush2.msra.mxu0 0.0
    %1479 = vmatprep.subr.mxu0 0.0
    %1480 = vmatpush2.msra.mxu0 0.0
    %1481 = vmatprep.subr.mxu0 0.0
    %1482 = vmatpush2.msra.mxu0 0.0
    %1483 = vmatprep.subr.mxu0 0.0
    %1484 = vmatpush2.msra.mxu0 0.0
    %1485 = vmatprep.subr.mxu0 0.0
    %1486 = vmatpush2.msra.mxu0 0.0
    %1487 = vmatprep.subr.mxu0 0.0
    %1488 = vmatpush2.msra.mxu0 0.0
    %1489 = vmatprep.subr.mxu0 0.0
    %1490 = vmatpush2.msra.mxu0 0.0
    %1491 = vmatprep.subr.mxu0 0.0
    %1492 = vmatpush2.msra.mxu0 0.0
    %1493 = vmatprep.subr.mxu0 0.0
    %1494 = vmatpush2.msra.mxu0 0.0
    %1495 = vmatprep.subr.mxu0 0.0
    %1496 = vmatpush2.msra.mxu0 0.0
    %1497 = vmatprep.subr.mxu0 0.0
    %1498 = vmatpush2.msra.mxu0 0.0
    %1499 = vmatprep.subr.mxu0 0.0
    %1500 = vmatpush2.msra.mxu0 0.0
    %1501 = vmatprep.subr.mxu0 0.0
    %1502 = vmatpush2.msra.mxu0 0.0
    %1503 = vmatprep.subr.mxu0 0.0
    %1504 = vmatpush2.msra.mxu0 0.0
    %1505 = vmatprep.mubr.f32.mxu0 0.0
    %1506 = vmatmul.mubr.f32.gmra.mxu0 %v1439
    %v1507 = vpop.f32.mrf.mxu0
    %v1508 = vadd.f32 0.0, %v1507
    %v1509 = vpop.f32.mrf.mxu0
    %1510 = vdwg.mxu0
    %1511 = vrot.lane.b32.xlu0 %v342, 112
    %v1512 = vpop.permute.xlu0 %1511
    %v1515 = vsel %vm353, %v1053, 0
    %1517 = vmatprep.subr.mxu0 0.0
    %1518 = vmatpush1.msra.mxu0 0.0
    %1519 = vmatprep.subr.mxu0 0.0
    %1520 = vmatpush1.msra.mxu0 0.0
    %1521 = vmatprep.subr.mxu0 0.0
    %1522 = vmatpush1.msra.mxu0 0.0
    %1523 = vmatprep.subr.mxu0 0.0
    %1524 = vmatpush1.msra.mxu0 0.0
    %1525 = vmatprep.subr.mxu0 0.0
    %1526 = vmatpush1.msra.mxu0 0.0
    %1527 = vmatprep.subr.mxu0 0.0
    %1528 = vmatpush1.msra.mxu0 0.0
    %1529 = vmatprep.subr.mxu0 0.0
    %1530 = vmatpush1.msra.mxu0 0.0
    %1531 = vmatprep.subr.mxu0 0.0
    %1532 = vmatpush1.msra.mxu0 0.0
    %1533 = vmatprep.subr.mxu0 0.0
    %1534 = vmatpush1.msra.mxu0 0.0
    %1535 = vmatprep.subr.mxu0 0.0
    %1536 = vmatpush1.msra.mxu0 0.0
    %1537 = vmatprep.subr.mxu0 0.0
    %1538 = vmatpush1.msra.mxu0 0.0
    %1539 = vmatprep.subr.mxu0 0.0
    %1540 = vmatpush1.msra.mxu0 0.0
    %1541 = vmatprep.subr.mxu0 0.0
    %1542 = vmatpush1.msra.mxu0 0.0
    %1543 = vmatprep.subr.mxu0 0.0
    %1544 = vmatpush1.msra.mxu0 0.0
    %1545 = vmatprep.subr.mxu0 0.0
    %1546 = vmatpush1.msra.mxu0 0.0
    %1547 = vmatprep.subr.mxu0 0.0
    %1548 = vmatpush1.msra.mxu0 %v1512
    %1549 = vmatprep.subr.mxu0 0.0
    %1550 = vmatpush2.msra.mxu0 0.0
    %1551 = vmatprep.subr.mxu0 0.0
    %1552 = vmatpush2.msra.mxu0 0.0
    %1553 = vmatprep.subr.mxu0 0.0
    %1554 = vmatpush2.msra.mxu0 0.0
    %1555 = vmatprep.subr.mxu0 0.0
    %1556 = vmatpush2.msra.mxu0 0.0
    %1557 = vmatprep.subr.mxu0 0.0
    %1558 = vmatpush2.msra.mxu0 0.0
    %1559 = vmatprep.subr.mxu0 0.0
    %1560 = vmatpush2.msra.mxu0 0.0
    %1561 = vmatprep.subr.mxu0 0.0
    %1562 = vmatpush2.msra.mxu0 0.0
    %1563 = vmatprep.subr.mxu0 0.0
    %1564 = vmatpush2.msra.mxu0 0.0
    %1565 = vmatprep.subr.mxu0 0.0
    %1566 = vmatpush2.msra.mxu0 0.0
    %1567 = vmatprep.subr.mxu0 0.0
    %1568 = vmatpush2.msra.mxu0 0.0
    %1569 = vmatprep.subr.mxu0 0.0
    %1570 = vmatpush2.msra.mxu0 0.0
    %1571 = vmatprep.subr.mxu0 0.0
    %1572 = vmatpush2.msra.mxu0 0.0
    %1573 = vmatprep.subr.mxu0 0.0
    %1574 = vmatpush2.msra.mxu0 0.0
    %1575 = vmatprep.subr.mxu0 0.0
    %1576 = vmatpush2.msra.mxu0 0.0
    %1577 = vmatprep.subr.mxu0 0.0
    %1578 = vmatpush2.msra.mxu0 0.0
    %1579 = vmatprep.subr.mxu0 0.0
    %1580 = vmatpush2.msra.mxu0 0.0
    %1581 = vmatprep.mubr.f32.mxu0 0.0
    %1582 = vmatmul.mubr.f32.gmra.mxu0 %v1515
    %v1583 = vpop.f32.mrf.mxu0
    %v1584 = vadd.f32 0.0, %v1583
    %v1585 = vpop.f32.mrf.mxu0
    %1586 = vdwg.mxu0
    %1587 = vrot.lane.b32.xlu0 %v347, 112
    %v1588 = vpop.permute.xlu0 %1587
    %v1591 = vsel %vm353, %v1054, 0
    %1593 = vmatprep.subr.mxu0 0.0
    %1594 = vmatpush1.msra.mxu0 0.0
    %1595 = vmatprep.subr.mxu0 0.0
    %1596 = vmatpush1.msra.mxu0 0.0
    %1597 = vmatprep.subr.mxu0 0.0
    %1598 = vmatpush1.msra.mxu0 0.0
    %1599 = vmatprep.subr.mxu0 0.0
    %1600 = vmatpush1.msra.mxu0 0.0
    %1601 = vmatprep.subr.mxu0 0.0
    %1602 = vmatpush1.msra.mxu0 0.0
    %1603 = vmatprep.subr.mxu0 0.0
    %1604 = vmatpush1.msra.mxu0 0.0
    %1605 = vmatprep.subr.mxu0 0.0
    %1606 = vmatpush1.msra.mxu0 0.0
    %1607 = vmatprep.subr.mxu0 0.0
    %1608 = vmatpush1.msra.mxu0 0.0
    %1609 = vmatprep.subr.mxu0 0.0
    %1610 = vmatpush1.msra.mxu0 0.0
    %1611 = vmatprep.subr.mxu0 0.0
    %1612 = vmatpush1.msra.mxu0 0.0
    %1613 = vmatprep.subr.mxu0 0.0
    %1614 = vmatpush1.msra.mxu0 0.0
    %1615 = vmatprep.subr.mxu0 0.0
    %1616 = vmatpush1.msra.mxu0 0.0
    %1617 = vmatprep.subr.mxu0 0.0
    %1618 = vmatpush1.msra.mxu0 0.0
    %1619 = vmatprep.subr.mxu0 0.0
    %1620 = vmatpush1.msra.mxu0 0.0
    %1621 = vmatprep.subr.mxu0 0.0
    %1622 = vmatpush1.msra.mxu0 0.0
    %1623 = vmatprep.subr.mxu0 0.0
    %1624 = vmatpush1.msra.mxu0 %v1588
    %1625 = vmatprep.subr.mxu0 0.0
    %1626 = vmatpush2.msra.mxu0 0.0
    %1627 = vmatprep.subr.mxu0 0.0
    %1628 = vmatpush2.msra.mxu0 0.0
    %1629 = vmatprep.subr.mxu0 0.0
    %1630 = vmatpush2.msra.mxu0 0.0
    %1631 = vmatprep.subr.mxu0 0.0
    %1632 = vmatpush2.msra.mxu0 0.0
    %1633 = vmatprep.subr.mxu0 0.0
    %1634 = vmatpush2.msra.mxu0 0.0
    %1635 = vmatprep.subr.mxu0 0.0
    %1636 = vmatpush2.msra.mxu0 0.0
    %1637 = vmatprep.subr.mxu0 0.0
    %1638 = vmatpush2.msra.mxu0 0.0
    %1639 = vmatprep.subr.mxu0 0.0
    %1640 = vmatpush2.msra.mxu0 0.0
    %1641 = vmatprep.subr.mxu0 0.0
    %1642 = vmatpush2.msra.mxu0 0.0
    %1643 = vmatprep.subr.mxu0 0.0
    %1644 = vmatpush2.msra.mxu0 0.0
    %1645 = vmatprep.subr.mxu0 0.0
    %1646 = vmatpush2.msra.mxu0 0.0
    %1647 = vmatprep.subr.mxu0 0.0
    %1648 = vmatpush2.msra.mxu0 0.0
    %1649 = vmatprep.subr.mxu0 0.0
    %1650 = vmatpush2.msra.mxu0 0.0
    %1651 = vmatprep.subr.mxu0 0.0
    %1652 = vmatpush2.msra.mxu0 0.0
    %1653 = vmatprep.subr.mxu0 0.0
    %1654 = vmatpush2.msra.mxu0 0.0
    %1655 = vmatprep.subr.mxu0 0.0
    %1656 = vmatpush2.msra.mxu0 0.0
    %1657 = vmatprep.mubr.f32.mxu0 0.0
    %1658 = vmatmul.mubr.f32.gmra.mxu0 %v1591
    %v1659 = vpop.f32.mrf.mxu0
    %v1660 = vadd.f32 0.0, %v1659
    %v1661 = vpop.f32.mrf.mxu0
    %1662 = vdwg.mxu0
    %v1663 = vld [vmem:[%s2] sm:$0xff]
    %v1664 = vld [vmem:[%s2 + $0x8] sm:$0xff]
    %v1665 = vld [vmem:[%s2 + $0x10] sm:$0xff]
    %v1666 = vld [vmem:[%s2 + $0x18] sm:$0xff]
    %v1668 = vsel %vm353, %v1128, 0
    %v1671 = vsel %vm353, %v1204, 0
    %1673 = vmatprep.subr.mxu0 0.0
    %1674 = vmatpush1.msra.mxu0 0.0
    %1675 = vmatprep.subr.mxu0 0.0
    %1676 = vmatpush1.msra.mxu0 0.0
    %1677 = vmatprep.subr.mxu0 0.0
    %1678 = vmatpush1.msra.mxu0 0.0
    %1679 = vmatprep.subr.mxu0 0.0
    %1680 = vmatpush1.msra.mxu0 0.0
    %1681 = vmatprep.subr.mxu0 0.0
    %1682 = vmatpush1.msra.mxu0 0.0
    %1683 = vmatprep.subr.mxu0 0.0
    %1684 = vmatpush1.msra.mxu0 0.0
    %1685 = vmatprep.subr.mxu0 0.0
    %1686 = vmatpush1.msra.mxu0 0.0
    %1687 = vmatprep.subr.mxu0 0.0
    %1688 = vmatpush1.msra.mxu0 0.0
    %1689 = vmatprep.subr.mxu0 0.0
    %1690 = vmatpush1.msra.mxu0 0.0
    %1691 = vmatprep.subr.mxu0 0.0
    %1692 = vmatpush1.msra.mxu0 0.0
    %1693 = vmatprep.subr.mxu0 0.0
    %1694 = vmatpush1.msra.mxu0 0.0
    %1695 = vmatprep.subr.mxu0 0.0
    %1696 = vmatpush1.msra.mxu0 0.0
    %1697 = vmatprep.subr.mxu0 0.0
    %1698 = vmatpush1.msra.mxu0 0.0
    %1699 = vmatprep.subr.mxu0 0.0
    %1700 = vmatpush1.msra.mxu0 0.0
    %1701 = vmatprep.subr.mxu0 0.0
    %1702 = vmatpush1.msra.mxu0 0.0
    %1703 = vmatprep.subr.mxu0 0.0
    %1704 = vmatpush1.msra.mxu0 %v1663
    %1705 = vmatprep.subr.mxu0 0.0
    %1706 = vmatpush2.msra.mxu0 0.0
    %1707 = vmatprep.subr.mxu0 0.0
    %1708 = vmatpush2.msra.mxu0 0.0
    %1709 = vmatprep.subr.mxu0 0.0
    %1710 = vmatpush2.msra.mxu0 0.0
    %1711 = vmatprep.subr.mxu0 0.0
    %1712 = vmatpush2.msra.mxu0 0.0
    %1713 = vmatprep.subr.mxu0 0.0
    %1714 = vmatpush2.msra.mxu0 0.0
    %1715 = vmatprep.subr.mxu0 0.0
    %1716 = vmatpush2.msra.mxu0 0.0
    %1717 = vmatprep.subr.mxu0 0.0
    %1718 = vmatpush2.msra.mxu0 0.0
    %1719 = vmatprep.subr.mxu0 0.0
    %1720 = vmatpush2.msra.mxu0 0.0
    %1721 = vmatprep.subr.mxu0 0.0
    %1722 = vmatpush2.msra.mxu0 0.0
    %1723 = vmatprep.subr.mxu0 0.0
    %1724 = vmatpush2.msra.mxu0 0.0
    %1725 = vmatprep.subr.mxu0 0.0
    %1726 = vmatpush2.msra.mxu0 0.0
    %1727 = vmatprep.subr.mxu0 0.0
    %1728 = vmatpush2.msra.mxu0 0.0
    %1729 = vmatprep.subr.mxu0 0.0
    %1730 = vmatpush2.msra.mxu0 0.0
    %1731 = vmatprep.subr.mxu0 0.0
    %1732 = vmatpush2.msra.mxu0 0.0
    %1733 = vmatprep.subr.mxu0 0.0
    %1734 = vmatpush2.msra.mxu0 0.0
    %1735 = vmatprep.subr.mxu0 0.0
    %1736 = vmatpush2.msra.mxu0 0.0
    %1737 = vmatprep.mubr.f32.mxu0 0.0
    %1738 = vmatmul.mubr.f32.gmra.mxu0 %v1668
    %v1739 = vpop.f32.mrf.mxu0
    %v1740 = vadd.f32 0.0, %v1739
    %v1741 = vpop.f32.mrf.mxu0
    %1742 = vmatprep.mubr.f32.mxu0 0.0
    %1743 = vmatmul.mubr.f32.gmra.mxu0 %v1671
    %v1744 = vpop.f32.mrf.mxu0
    %v1745 = vadd.f32 0.0, %v1744
    %v1746 = vpop.f32.mrf.mxu0
    %1747 = vdwg.mxu0
    %v1749 = vsel %vm353, %v1280, 0
    %v1752 = vsel %vm353, %v1356, 0
    %1754 = vmatprep.subr.mxu0 0.0
    %1755 = vmatpush1.msra.mxu0 0.0
    %1756 = vmatprep.subr.mxu0 0.0
    %1757 = vmatpush1.msra.mxu0 0.0
    %1758 = vmatprep.subr.mxu0 0.0
    %1759 = vmatpush1.msra.mxu0 0.0
    %1760 = vmatprep.subr.mxu0 0.0
    %1761 = vmatpush1.msra.mxu0 0.0
    %1762 = vmatprep.subr.mxu0 0.0
    %1763 = vmatpush1.msra.mxu0 0.0
    %1764 = vmatprep.subr.mxu0 0.0
    %1765 = vmatpush1.msra.mxu0 0.0
    %1766 = vmatprep.subr.mxu0 0.0
    %1767 = vmatpush1.msra.mxu0 0.0
    %1768 = vmatprep.subr.mxu0 0.0
    %1769 = vmatpush1.msra.mxu0 0.0
    %1770 = vmatprep.subr.mxu0 0.0
    %1771 = vmatpush1.msra.mxu0 0.0
    %1772 = vmatprep.subr.mxu0 0.0
    %1773 = vmatpush1.msra.mxu0 0.0
    %1774 = vmatprep.subr.mxu0 0.0
    %1775 = vmatpush1.msra.mxu0 0.0
    %1776 = vmatprep.subr.mxu0 0.0
    %1777 = vmatpush1.msra.mxu0 0.0
    %1778 = vmatprep.subr.mxu0 0.0
    %1779 = vmatpush1.msra.mxu0 0.0
    %1780 = vmatprep.subr.mxu0 0.0
    %1781 = vmatpush1.msra.mxu0 0.0
    %1782 = vmatprep.subr.mxu0 0.0
    %1783 = vmatpush1.msra.mxu0 0.0
    %1784 = vmatprep.subr.mxu0 0.0
    %1785 = vmatpush1.msra.mxu0 %v1664
    %1786 = vmatprep.subr.mxu0 0.0
    %1787 = vmatpush2.msra.mxu0 0.0
    %1788 = vmatprep.subr.mxu0 0.0
    %1789 = vmatpush2.msra.mxu0 0.0
    %1790 = vmatprep.subr.mxu0 0.0
    %1791 = vmatpush2.msra.mxu0 0.0
    %1792 = vmatprep.subr.mxu0 0.0
    %1793 = vmatpush2.msra.mxu0 0.0
    %1794 = vmatprep.subr.mxu0 0.0
    %1795 = vmatpush2.msra.mxu0 0.0
    %1796 = vmatprep.subr.mxu0 0.0
    %1797 = vmatpush2.msra.mxu0 0.0
    %1798 = vmatprep.subr.mxu0 0.0
    %1799 = vmatpush2.msra.mxu0 0.0
    %1800 = vmatprep.subr.mxu0 0.0
    %1801 = vmatpush2.msra.mxu0 0.0
    %1802 = vmatprep.subr.mxu0 0.0
    %1803 = vmatpush2.msra.mxu0 0.0
    %1804 = vmatprep.subr.mxu0 0.0
    %1805 = vmatpush2.msra.mxu0 0.0
    %1806 = vmatprep.subr.mxu0 0.0
    %1807 = vmatpush2.msra.mxu0 0.0
    %1808 = vmatprep.subr.mxu0 0.0
    %1809 = vmatpush2.msra.mxu0 0.0
    %1810 = vmatprep.subr.mxu0 0.0
    %1811 = vmatpush2.msra.mxu0 0.0
    %1812 = vmatprep.subr.mxu0 0.0
    %1813 = vmatpush2.msra.mxu0 0.0
    %1814 = vmatprep.subr.mxu0 0.0
    %1815 = vmatpush2.msra.mxu0 0.0
    %1816 = vmatprep.subr.mxu0 0.0
    %1817 = vmatpush2.msra.mxu0 0.0
    %1818 = vmatprep.mubr.f32.mxu0 0.0
    %1819 = vmatmul.mubr.f32.gmra.mxu0 %v1749
    %v1820 = vpop.f32.mrf.mxu0
    %v1821 = vadd.f32 0.0, %v1820
    %v1822 = vpop.f32.mrf.mxu0
    %1823 = vmatprep.mubr.f32.mxu0 0.0
    %1824 = vmatmul.mubr.f32.gmra.mxu0 %v1752
    %v1825 = vpop.f32.mrf.mxu0
    %v1826 = vadd.f32 0.0, %v1825
    %v1827 = vpop.f32.mrf.mxu0
    %1828 = vdwg.mxu0
    %v1830 = vsel %vm353, %v1432, 0
    %v1833 = vsel %vm353, %v1508, 0
    %1835 = vmatprep.subr.mxu0 0.0
    %1836 = vmatpush1.msra.mxu0 0.0
    %1837 = vmatprep.subr.mxu0 0.0
    %1838 = vmatpush1.msra.mxu0 0.0
    %1839 = vmatprep.subr.mxu0 0.0
    %1840 = vmatpush1.msra.mxu0 0.0
    %1841 = vmatprep.subr.mxu0 0.0
    %1842 = vmatpush1.msra.mxu0 0.0
    %1843 = vmatprep.subr.mxu0 0.0
    %1844 = vmatpush1.msra.mxu0 0.0
    %1845 = vmatprep.subr.mxu0 0.0
    %1846 = vmatpush1.msra.mxu0 0.0
    %1847 = vmatprep.subr.mxu0 0.0
    %1848 = vmatpush1.msra.mxu0 0.0
    %1849 = vmatprep.subr.mxu0 0.0
    %1850 = vmatpush1.msra.mxu0 0.0
    %1851 = vmatprep.subr.mxu0 0.0
    %1852 = vmatpush1.msra.mxu0 0.0
    %1853 = vmatprep.subr.mxu0 0.0
    %1854 = vmatpush1.msra.mxu0 0.0
    %1855 = vmatprep.subr.mxu0 0.0
    %1856 = vmatpush1.msra.mxu0 0.0
    %1857 = vmatprep.subr.mxu0 0.0
    %1858 = vmatpush1.msra.mxu0 0.0
    %1859 = vmatprep.subr.mxu0 0.0
    %1860 = vmatpush1.msra.mxu0 0.0
    %1861 = vmatprep.subr.mxu0 0.0
    %1862 = vmatpush1.msra.mxu0 0.0
    %1863 = vmatprep.subr.mxu0 0.0
    %1864 = vmatpush1.msra.mxu0 0.0
    %1865 = vmatprep.subr.mxu0 0.0
    %1866 = vmatpush1.msra.mxu0 %v1665
    %1867 = vmatprep.subr.mxu0 0.0
    %1868 = vmatpush2.msra.mxu0 0.0
    %1869 = vmatprep.subr.mxu0 0.0
    %1870 = vmatpush2.msra.mxu0 0.0
    %1871 = vmatprep.subr.mxu0 0.0
    %1872 = vmatpush2.msra.mxu0 0.0
    %1873 = vmatprep.subr.mxu0 0.0
    %1874 = vmatpush2.msra.mxu0 0.0
    %1875 = vmatprep.subr.mxu0 0.0
    %1876 = vmatpush2.msra.mxu0 0.0
    %1877 = vmatprep.subr.mxu0 0.0
    %1878 = vmatpush2.msra.mxu0 0.0
    %1879 = vmatprep.subr.mxu0 0.0
    %1880 = vmatpush2.msra.mxu0 0.0
    %1881 = vmatprep.subr.mxu0 0.0
    %1882 = vmatpush2.msra.mxu0 0.0
    %1883 = vmatprep.subr.mxu0 0.0
    %1884 = vmatpush2.msra.mxu0 0.0
    %1885 = vmatprep.subr.mxu0 0.0
    %1886 = vmatpush2.msra.mxu0 0.0
    %1887 = vmatprep.subr.mxu0 0.0
    %1888 = vmatpush2.msra.mxu0 0.0
    %1889 = vmatprep.subr.mxu0 0.0
    %1890 = vmatpush2.msra.mxu0 0.0
    %1891 = vmatprep.subr.mxu0 0.0
    %1892 = vmatpush2.msra.mxu0 0.0
    %1893 = vmatprep.subr.mxu0 0.0
    %1894 = vmatpush2.msra.mxu0 0.0
    %1895 = vmatprep.subr.mxu0 0.0
    %1896 = vmatpush2.msra.mxu0 0.0
    %1897 = vmatprep.subr.mxu0 0.0
    %1898 = vmatpush2.msra.mxu0 0.0
    %1899 = vmatprep.mubr.f32.mxu0 0.0
    %1900 = vmatmul.mubr.f32.gmra.mxu0 %v1830
    %v1901 = vpop.f32.mrf.mxu0
    %v1902 = vadd.f32 0.0, %v1901
    %v1903 = vpop.f32.mrf.mxu0
    %1904 = vmatprep.mubr.f32.mxu0 0.0
    %1905 = vmatmul.mubr.f32.gmra.mxu0 %v1833
    %v1906 = vpop.f32.mrf.mxu0
    %v1907 = vadd.f32 0.0, %v1906
    %v1908 = vpop.f32.mrf.mxu0
    %1909 = vdwg.mxu0
    %v1911 = vsel %vm353, %v1584, 0
    %v1914 = vsel %vm353, %v1660, 0
    %1916 = vmatprep.subr.mxu0 0.0
    %1917 = vmatpush1.msra.mxu0 0.0
    %1918 = vmatprep.subr.mxu0 0.0
    %1919 = vmatpush1.msra.mxu0 0.0
    %1920 = vmatprep.subr.mxu0 0.0
    %1921 = vmatpush1.msra.mxu0 0.0
    %1922 = vmatprep.subr.mxu0 0.0
    %1923 = vmatpush1.msra.mxu0 0.0
    %1924 = vmatprep.subr.mxu0 0.0
    %1925 = vmatpush1.msra.mxu0 0.0
    %1926 = vmatprep.subr.mxu0 0.0
    %1927 = vmatpush1.msra.mxu0 0.0
    %1928 = vmatprep.subr.mxu0 0.0
    %1929 = vmatpush1.msra.mxu0 0.0
    %1930 = vmatprep.subr.mxu0 0.0
    %1931 = vmatpush1.msra.mxu0 0.0
    %1932 = vmatprep.subr.mxu0 0.0
    %1933 = vmatpush1.msra.mxu0 0.0
    %1934 = vmatprep.subr.mxu0 0.0
    %1935 = vmatpush1.msra.mxu0 0.0
    %1936 = vmatprep.subr.mxu0 0.0
    %1937 = vmatpush1.msra.mxu0 0.0
    %1938 = vmatprep.subr.mxu0 0.0
    %1939 = vmatpush1.msra.mxu0 0.0
    %1940 = vmatprep.subr.mxu0 0.0
    %1941 = vmatpush1.msra.mxu0 0.0
    %1942 = vmatprep.subr.mxu0 0.0
    %1943 = vmatpush1.msra.mxu0 0.0
    %1944 = vmatprep.subr.mxu0 0.0
    %1945 = vmatpush1.msra.mxu0 0.0
    %1946 = vmatprep.subr.mxu0 0.0
    %1947 = vmatpush1.msra.mxu0 %v1666
    %1948 = vmatprep.subr.mxu0 0.0
    %1949 = vmatpush2.msra.mxu0 0.0
    %1950 = vmatprep.subr.mxu0 0.0
    %1951 = vmatpush2.msra.mxu0 0.0
    %1952 = vmatprep.subr.mxu0 0.0
    %1953 = vmatpush2.msra.mxu0 0.0
    %1954 = vmatprep.subr.mxu0 0.0
    %1955 = vmatpush2.msra.mxu0 0.0
    %1956 = vmatprep.subr.mxu0 0.0
    %1957 = vmatpush2.msra.mxu0 0.0
    %1958 = vmatprep.subr.mxu0 0.0
    %1959 = vmatpush2.msra.mxu0 0.0
    %1960 = vmatprep.subr.mxu0 0.0
    %1961 = vmatpush2.msra.mxu0 0.0
    %1962 = vmatprep.subr.mxu0 0.0
    %1963 = vmatpush2.msra.mxu0 0.0
    %1964 = vmatprep.subr.mxu0 0.0
    %1965 = vmatpush2.msra.mxu0 0.0
    %1966 = vmatprep.subr.mxu0 0.0
    %1967 = vmatpush2.msra.mxu0 0.0
    %1968 = vmatprep.subr.mxu0 0.0
    %1969 = vmatpush2.msra.mxu0 0.0
    %1970 = vmatprep.subr.mxu0 0.0
    %1971 = vmatpush2.msra.mxu0 0.0
    %1972 = vmatprep.subr.mxu0 0.0
    %1973 = vmatpush2.msra.mxu0 0.0
    %1974 = vmatprep.subr.mxu0 0.0
    %1975 = vmatpush2.msra.mxu0 0.0
    %1976 = vmatprep.subr.mxu0 0.0
    %1977 = vmatpush2.msra.mxu0 0.0
    %1978 = vmatprep.subr.mxu0 0.0
    %1979 = vmatpush2.msra.mxu0 0.0
    %1980 = vmatprep.mubr.f32.mxu0 0.0
    %1981 = vmatmul.mubr.f32.gmra.mxu0 %v1911
    %v1982 = vpop.f32.mrf.mxu0
    %v1983 = vadd.f32 0.0, %v1982
    %v1984 = vpop.f32.mrf.mxu0
    %1985 = vmatprep.mubr.f32.mxu0 0.0
    %1986 = vmatmul.mubr.f32.gmra.mxu0 %v1914
    %v1987 = vpop.f32.mrf.mxu0
    %v1988 = vadd.f32 0.0, %v1987
    %v1989 = vpop.f32.mrf.mxu0
    %1990 = vdwg.mxu0
    %v1991 = vsel %vm43, %v1740, 0.0
    %v1992 = vsel %vm43, %v1821, 0.0
    %v1993 = vadd.f32 %v1991, %v1992
    %v1994 = vsel %vm43, %v1902, 0.0
    %v1995 = vadd.f32 %v1993, %v1994
    %v1996 = vsel %vm43, %v1983, 0.0
    %v1997 = vadd.f32 %v1995, %v1996
    %v1998 = vsel %vm43, %v1745, 0.0
    %v1999 = vsel %vm43, %v1826, 0.0
    %v2000 = vadd.f32 %v1998, %v1999
    %v2001 = vsel %vm43, %v1907, 0.0
    %v2002 = vadd.f32 %v2000, %v2001
    %v2003 = vsel %vm43, %v1988, 0.0
    %v2004 = vadd.f32 %v2002, %v2003
    %v2005 = vadd.f32 %v24, %v1997
    %v2006 = vadd.f32 %v25, %v2004
    %v2007 = vsel %vm43, %v2005, 0.0
    %2008 = vadd.xlane.f32.xlu0 %v2007
    %v2009 = vpop.xlane.xlu0 %2008
    %v2010 = vsel %vm43, %v2006, 0.0
    %2011 = vadd.xlane.f32.xlu0 %v2010
    %v2012 = vpop.xlane.xlu0 %2011
    %v2013 = vrcp.pop 32.0
    %v2014 = vmul.f32 %v2009, %v2013
    %v2015 = vmul.f32 %v2012, %v2013
    %v2016 = vsub.f32 %v2005, %v2014
    %v2017 = vsub.f32 %v2006, %v2015
    %v2018 = vmul.f32 %v2016, %v2016
    %v2019 = vmul.f32 %v2017, %v2017
    %v2020 = vsel %vm43, %v2018, 0.0
    %2021 = vadd.xlane.f32.xlu0 %v2020
    %v2022 = vpop.xlane.xlu0 %2021
    %v2023 = vsel %vm43, %v2019, 0.0
    %2024 = vadd.xlane.f32.xlu0 %v2023
    %v2025 = vpop.xlane.xlu0 %2024
    %v2026 = vmul.f32 %v2022, %v2013
    %v2027 = vmul.f32 %v2025, %v2013
    %v2028 = vadd.f32 %v2026, 1e-05
    %v2029 = vadd.f32 %v2027, 1e-05
    %v2030 = vrsqrt.pop %v2028
    %v2031 = vrsqrt.pop %v2029
    %v2032 = vmul.f32 %v2016, %v2030
    %v2033 = vmul.f32 %v2017, %v2031
    %v2034 = vlaneseq
    %v2035 = vshrl.u32 %v2034, 7
    %v2036 = vsub.s32 0, %v2035
    %v2037 = vrot.slane %v26, %v2036
    %v2038 = vmul.f32 %v2032, %v2037
    %v2039 = vmul.f32 %v2033, %v2037
    %v2040 = vlaneseq
    %v2041 = vshrl.u32 %v2040, 7
    %v2042 = vsub.s32 1, %v2041
    %v2043 = vrot.slane %v26, %v2042
    %v2044 = vadd.f32 %v2038, %v2043
    %v2045 = vadd.f32 %v2039, %v2043
    %v2046 = vld [vmem:[%s3] sm:$0xff]
    %v2047 = vld [vmem:[%s3 + $0x8] sm:$0xff]
    %v2048 = vld [vmem:[%s3 + $0x10] sm:$0xff]
    %v2049 = vld [vmem:[%s3 + $0x18] sm:$0xff]
    %v2051 = vsel %vm43, %v2044, 0
    %v2054 = vsel %vm43, %v2045, 0
    %2056 = vmatprep.subr.mxu0 0.0
    %2057 = vmatpush1.msra.mxu0 0.0
    %2058 = vmatprep.subr.mxu0 0.0
    %2059 = vmatpush1.msra.mxu0 0.0
    %2060 = vmatprep.subr.mxu0 0.0
    %2061 = vmatpush1.msra.mxu0 0.0
    %2062 = vmatprep.subr.mxu0 0.0
    %2063 = vmatpush1.msra.mxu0 0.0
    %2064 = vmatprep.subr.mxu0 0.0
    %2065 = vmatpush1.msra.mxu0 0.0
    %2066 = vmatprep.subr.mxu0 0.0
    %2067 = vmatpush1.msra.mxu0 0.0
    %2068 = vmatprep.subr.mxu0 0.0
    %2069 = vmatpush1.msra.mxu0 0.0
    %2070 = vmatprep.subr.mxu0 0.0
    %2071 = vmatpush1.msra.mxu0 0.0
    %2072 = vmatprep.subr.mxu0 0.0
    %2073 = vmatpush1.msra.mxu0 0.0
    %2074 = vmatprep.subr.mxu0 0.0
    %2075 = vmatpush1.msra.mxu0 0.0
    %2076 = vmatprep.subr.mxu0 0.0
    %2077 = vmatpush1.msra.mxu0 0.0
    %2078 = vmatprep.subr.mxu0 0.0
    %2079 = vmatpush1.msra.mxu0 0.0
    %2080 = vmatprep.subr.mxu0 0.0
    %2081 = vmatpush1.msra.mxu0 %v2049
    %2082 = vmatprep.subr.mxu0 0.0
    %2083 = vmatpush1.msra.mxu0 %v2048
    %2084 = vmatprep.subr.mxu0 0.0
    %2085 = vmatpush1.msra.mxu0 %v2047
    %2086 = vmatprep.subr.mxu0 0.0
    %2087 = vmatpush1.msra.mxu0 %v2046
    %2088 = vmatprep.subr.mxu0 0.0
    %2089 = vmatpush2.msra.mxu0 0.0
    %2090 = vmatprep.subr.mxu0 0.0
    %2091 = vmatpush2.msra.mxu0 0.0
    %2092 = vmatprep.subr.mxu0 0.0
    %2093 = vmatpush2.msra.mxu0 0.0
    %2094 = vmatprep.subr.mxu0 0.0
    %2095 = vmatpush2.msra.mxu0 0.0
    %2096 = vmatprep.subr.mxu0 0.0
    %2097 = vmatpush2.msra.mxu0 0.0
    %2098 = vmatprep.subr.mxu0 0.0
    %2099 = vmatpush2.msra.mxu0 0.0
    %2100 = vmatprep.subr.mxu0 0.0
    %2101 = vmatpush2.msra.mxu0 0.0
    %2102 = vmatprep.subr.mxu0 0.0
    %2103 = vmatpush2.msra.mxu0 0.0
    %2104 = vmatprep.subr.mxu0 0.0
    %2105 = vmatpush2.msra.mxu0 0.0
    %2106 = vmatprep.subr.mxu0 0.0
    %2107 = vmatpush2.msra.mxu0 0.0
    %2108 = vmatprep.subr.mxu0 0.0
    %2109 = vmatpush2.msra.mxu0 0.0
    %2110 = vmatprep.subr.mxu0 0.0
    %2111 = vmatpush2.msra.mxu0 0.0
    %2112 = vmatprep.subr.mxu0 0.0
    %2113 = vmatpush2.msra.mxu0 0.0
    %2114 = vmatprep.subr.mxu0 0.0
    %2115 = vmatpush2.msra.mxu0 0.0
    %2116 = vmatprep.subr.mxu0 0.0
    %2117 = vmatpush2.msra.mxu0 0.0
    %2118 = vmatprep.subr.mxu0 0.0
    %2119 = vmatpush2.msra.mxu0 0.0
    %2120 = vmatprep.mubr.f32.mxu0 0.0
    %2121 = vmatmul.mubr.f32.gmra.mxu0 %v2051
    %v2122 = vpop.f32.mrf.mxu0
    %v2123 = vadd.f32 0.0, %v2122
    %v2124 = vpop.f32.mrf.mxu0
    %2125 = vmatprep.mubr.f32.mxu0 0.0
    %2126 = vmatmul.mubr.f32.gmra.mxu0 %v2054
    %v2127 = vpop.f32.mrf.mxu0
    %v2128 = vadd.f32 0.0, %v2127
    %v2129 = vpop.f32.mrf.mxu0
    %2130 = vdwg.mxu0
    %v2131 = vmax.f32 %v2123, 0.0
    %v2132 = vmax.f32 %v2128, 0.0
    %v2133 = vld [vmem:[%s4] sm:$0xff]
    %v2134 = vld [vmem:[%s4 + $0x8] sm:$0xff]
    %v2135 = vld [vmem:[%s4 + $0x10] sm:$0xff]
    %v2136 = vld [vmem:[%s4 + $0x18] sm:$0xff]
    %v2137 = vld [vmem:[%s4 + $0x20] sm:$0xff]
    %v2138 = vld [vmem:[%s4 + $0x28] sm:$0xff]
    %v2139 = vld [vmem:[%s4 + $0x30] sm:$0xff]
    %v2140 = vld [vmem:[%s4 + $0x38] sm:$0xff]
    %v2141 = vld [vmem:[%s4 + $0x40] sm:$0xff]
    %v2142 = vld [vmem:[%s4 + $0x48] sm:$0xff]
    %v2143 = vld [vmem:[%s4 + $0x50] sm:$0xff]
    %v2144 = vld [vmem:[%s4 + $0x58] sm:$0xff]
    %v2145 = vld [vmem:[%s4 + $0x60] sm:$0xff]
    %v2146 = vld [vmem:[%s4 + $0x68] sm:$0xff]
    %v2147 = vld [vmem:[%s4 + $0x70] sm:$0xff]
    %v2148 = vld [vmem:[%s4 + $0x78] sm:$0xff]
    %2149 = vmatprep.subr.mxu0 0.0
    %2150 = vmatpush1.msra.mxu0 %v2148
    %2151 = vmatprep.subr.mxu0 0.0
    %2152 = vmatpush1.msra.mxu0 %v2147
    %2153 = vmatprep.subr.mxu0 0.0
    %2154 = vmatpush1.msra.mxu0 %v2146
    %2155 = vmatprep.subr.mxu0 0.0
    %2156 = vmatpush1.msra.mxu0 %v2145
    %2157 = vmatprep.subr.mxu0 0.0
    %2158 = vmatpush1.msra.mxu0 %v2144
    %2159 = vmatprep.subr.mxu0 0.0
    %2160 = vmatpush1.msra.mxu0 %v2143
    %2161 = vmatprep.subr.mxu0 0.0
    %2162 = vmatpush1.msra.mxu0 %v2142
    %2163 = vmatprep.subr.mxu0 0.0
    %2164 = vmatpush1.msra.mxu0 %v2141
    %2165 = vmatprep.subr.mxu0 0.0
    %2166 = vmatpush1.msra.mxu0 %v2140
    %2167 = vmatprep.subr.mxu0 0.0
    %2168 = vmatpush1.msra.mxu0 %v2139
    %2169 = vmatprep.subr.mxu0 0.0
    %2170 = vmatpush1.msra.mxu0 %v2138
    %2171 = vmatprep.subr.mxu0 0.0
    %2172 = vmatpush1.msra.mxu0 %v2137
    %2173 = vmatprep.subr.mxu0 0.0
    %2174 = vmatpush1.msra.mxu0 %v2136
    %2175 = vmatprep.subr.mxu0 0.0
    %2176 = vmatpush1.msra.mxu0 %v2135
    %2177 = vmatprep.subr.mxu0 0.0
    %2178 = vmatpush1.msra.mxu0 %v2134
    %2179 = vmatprep.subr.mxu0 0.0
    %2180 = vmatpush1.msra.mxu0 %v2133
    %2181 = vmatprep.subr.mxu0 0.0
    %2182 = vmatpush2.msra.mxu0 0.0
    %2183 = vmatprep.subr.mxu0 0.0
    %2184 = vmatpush2.msra.mxu0 0.0
    %2185 = vmatprep.subr.mxu0 0.0
    %2186 = vmatpush2.msra.mxu0 0.0
    %2187 = vmatprep.subr.mxu0 0.0
    %2188 = vmatpush2.msra.mxu0 0.0
    %2189 = vmatprep.subr.mxu0 0.0
    %2190 = vmatpush2.msra.mxu0 0.0
    %2191 = vmatprep.subr.mxu0 0.0
    %2192 = vmatpush2.msra.mxu0 0.0
    %2193 = vmatprep.subr.mxu0 0.0
    %2194 = vmatpush2.msra.mxu0 0.0
    %2195 = vmatprep.subr.mxu0 0.0
    %2196 = vmatpush2.msra.mxu0 0.0
    %2197 = vmatprep.subr.mxu0 0.0
    %2198 = vmatpush2.msra.mxu0 0.0
    %2199 = vmatprep.subr.mxu0 0.0
    %2200 = vmatpush2.msra.mxu0 0.0
    %2201 = vmatprep.subr.mxu0 0.0
    %2202 = vmatpush2.msra.mxu0 0.0
    %2203 = vmatprep.subr.mxu0 0.0
    %2204 = vmatpush2.msra.mxu0 0.0
    %2205 = vmatprep.subr.mxu0 0.0
    %2206 = vmatpush2.msra.mxu0 0.0
    %2207 = vmatprep.subr.mxu0 0.0
    %2208 = vmatpush2.msra.mxu0 0.0
    %2209 = vmatprep.subr.mxu0 0.0
    %2210 = vmatpush2.msra.mxu0 0.0
    %2211 = vmatprep.subr.mxu0 0.0
    %2212 = vmatpush2.msra.mxu0 0.0
    %2213 = vmatprep.mubr.f32.mxu0 0.0
    %2214 = vmatmul.mubr.f32.gmra.mxu0 %v2131
    %v2215 = vpop.f32.mrf.mxu0
    %v2216 = vadd.f32 0.0, %v2215
    %v2217 = vpop.f32.mrf.mxu0
    %2218 = vmatprep.mubr.f32.mxu0 0.0
    %2219 = vmatmul.mubr.f32.gmra.mxu0 %v2132
    %v2220 = vpop.f32.mrf.mxu0
    %v2221 = vadd.f32 0.0, %v2220
    %v2222 = vpop.f32.mrf.mxu0
    %2223 = vdwg.mxu0
    %v2224 = vadd.f32 %v2044, %v2216
    %v2225 = vadd.f32 %v2045, %v2221
    %v2226 = vsel %vm43, %v2224, 0.0
    %2227 = vadd.xlane.f32.xlu0 %v2226
    %v2228 = vpop.xlane.xlu0 %2227
    %v2229 = vsel %vm43, %v2225, 0.0
    %2230 = vadd.xlane.f32.xlu0 %v2229
    %v2231 = vpop.xlane.xlu0 %2230
    %v2232 = vmul.f32 %v2228, %v2013
    %v2233 = vmul.f32 %v2231, %v2013
    %v2234 = vsub.f32 %v2224, %v2232
    %v2235 = vsub.f32 %v2225, %v2233
    %v2236 = vmul.f32 %v2234, %v2234
    %v2237 = vmul.f32 %v2235, %v2235
    %v2238 = vsel %vm43, %v2236, 0.0
    %2239 = vadd.xlane.f32.xlu0 %v2238
    %v2240 = vpop.xlane.xlu0 %2239
    %v2241 = vsel %vm43, %v2237, 0.0
    %2242 = vadd.xlane.f32.xlu0 %v2241
    %v2243 = vpop.xlane.xlu0 %2242
    %v2244 = vmul.f32 %v2240, %v2013
    %v2245 = vmul.f32 %v2243, %v2013
    %v2246 = vadd.f32 %v2244, 1e-05
    %v2247 = vadd.f32 %v2245, 1e-05
    %v2248 = vrsqrt.pop %v2246
    %v2249 = vrsqrt.pop %v2247
    %v2250 = vmul.f32 %v2234, %v2248
    %v2251 = vmul.f32 %v2235, %v2249
    %v2252 = vlaneseq
    %v2253 = vshrl.u32 %v2252, 7
    %v2254 = vsub.s32 2, %v2253
    %v2255 = vrot.slane %v26, %v2254
    %v2256 = vmul.f32 %v2250, %v2255
    %v2257 = vmul.f32 %v2251, %v2255
    %v2258 = vlaneseq
    %v2259 = vshrl.u32 %v2258, 7
    %v2260 = vsub.s32 3, %v2259
    %v2261 = vrot.slane %v26, %v2260
    %v2262 = vadd.f32 %v2256, %v2261
    %v2263 = vadd.f32 %v2257, %v2261
    %2264 = vst.msk [vmem:[#allocation2] sm:$0xff] %vm43, %v2262
    %2265 = vst.msk [vmem:[#allocation2 + $0x8] sm:$0xff] %vm43, %v2263
    // Predicated region
    $region26: #{decoder_block.1} parent=1 // pred_check
      _
    $region27: #{decoder_block.1} parent=1 // pred_check_branch
      %2267 = sbr.rel (0) target = $region29
    $region28: #{decoder_block.1} parent=1 // pred_region
      %s2269 = ssub.s32 256, 256
      %2270 = vsyncadd [#allocation3], %s2269
      %s2271 = sshll.u32 [#allocation2], 4
      %s2272 = int_to_ptr.vmem [resolvable:$true] %s2271
      %2277 = dma.vmem_to_hbm [thread:$0]  %s2272, 256, %s6, [#allocation3], 128, 128, 8
    $region29: #{decoder_block.1} parent=1 // pred_fallthru
      _
    // Predicated region
    $region30: #{decoder_block.1} parent=1 // pred_check
      _
    $region31: #{decoder_block.1} parent=1 // pred_check_branch
      %2279 = sbr.rel (0) target = $region33
    $region32: #{decoder_block.1} parent=1 // pred_region
      %2280 = dma.done [#allocation3], 256
    $region33: #{decoder_block.1} parent=1 // pred_fallthru
      _
    %2281 = vsyncpa [#allocation3], 1

</llo_original>
